<compile_context>
chip_gen: v6e
topology: v6e:2x2x1
jax: 0.10.0
libtpu: 0.0.40
codegen_flags: <defaults>
</compile_context>

<pallas_src>
import functools
import math

import jax
import jax.numpy as jnp
from jax import lax
from jax.experimental import pallas as pl
from jax.experimental.pallas import tpu as pltpu


# ----------------------- tiled matmul (projections) -------------------------

def _matmul_kernel(x_ref, w_ref, o_ref, acc_ref):
    @pl.when(pl.program_id(2) == 0)
    def _():
        acc_ref[...] = jnp.zeros_like(acc_ref)

    acc_ref[...] += jnp.dot(
        x_ref[...], w_ref[...], preferred_element_type=jnp.float32
    )

    @pl.when(pl.program_id(2) == pl.num_programs(2) - 1)
    def _():
        o_ref[...] = acc_ref[...].astype(o_ref.dtype)


def _pick_tile(dim, target):
    if dim <= target:
        return dim
    assert dim % target == 0, f"dim {dim} not divisible by tile {target}"
    return target


def pallas_matmul(x, w, *, tm=256, tn=256, tk=512):
    """x: (M, K), w: (K, N) -> (M, N), tiled with an f32 VMEM accumulator."""
    M, K = x.shape
    K2, N = w.shape
    assert K == K2
    tm = _pick_tile(M, tm)
    tn = _pick_tile(N, tn)
    tk = _pick_tile(K, tk)
    return pl.pallas_call(
        _matmul_kernel,
        out_shape=jax.ShapeDtypeStruct((M, N), x.dtype),
        grid_spec=pltpu.PrefetchScalarGridSpec(
            num_scalar_prefetch=0,
            grid=(M // tm, N // tn, K // tk),
            in_specs=[
                pl.BlockSpec((tm, tk), lambda i, j, k: (i, k)),
                pl.BlockSpec((tk, tn), lambda i, j, k: (k, j)),
            ],
            out_specs=pl.BlockSpec((tm, tn), lambda i, j, k: (i, j)),
            scratch_shapes=[pltpu.VMEM((tm, tn), jnp.float32)],
        ),
        compiler_params=pltpu.CompilerParams(
            dimension_semantics=("parallel", "parallel", "arbitrary")
        ),
    )(x, w)


# ------------------- flash attention with grouped GQA heads -----------------

def _make_flash_kernel(*, scale, n_rep, tq, tkv):
    def kernel(q_ref, k_ref, v_ref, o_ref, m_ref, l_ref, acc_ref):
        # q_ref:  (n_rep, TQ, D)  -- the n_rep query heads sharing one KV head
        # k_ref:  (TKV, D), v_ref: (TKV, D)
        # scratch: m_ref/l_ref (n_rep, TQ, 1), acc_ref (n_rep, TQ, D)  (f32)
        qi = pl.program_id(1)
        ki = pl.program_id(2)

        @pl.when(ki == 0)
        def _():
            m_ref[...] = jnp.full_like(m_ref, -jnp.inf)
            l_ref[...] = jnp.zeros_like(l_ref)
            acc_ref[...] = jnp.zeros_like(acc_ref)

        # Skip KV blocks that lie entirely above the causal diagonal.
        @pl.when(ki * tkv <= qi * tq + (tq - 1))
        def _():
            k = k_ref[...]                                   # (TKV, D)
            v = v_ref[...]                                   # (TKV, D)
            qs = q_ref[...] * scale                          # scale folded into Q
            row = qi * tq + lax.broadcasted_iota(jnp.int32, (tq, tkv), 0)
            col = ki * tkv + lax.broadcasted_iota(jnp.int32, (tq, tkv), 1)
            causal = col <= row                              # (TQ, TKV)

            for h in range(n_rep):                           # static unroll
                # Contract head_dim of both operands directly (no k.T).
                s = lax.dot_general(
                    qs[h], k,
                    dimension_numbers=(((1,), (1,)), ((), ())),
                    preferred_element_type=jnp.float32,
                )                                            # (TQ, TKV) f32
                s = jnp.where(causal, s, -jnp.inf)

                m_prev = m_ref[h]                            # (TQ, 1)
                m_new = jnp.maximum(m_prev, jnp.max(s, axis=-1, keepdims=True))
                alpha = jnp.exp(m_prev - m_new)
                p = jnp.exp(s - m_new)                       # (TQ, TKV)
                l_ref[h] = alpha * l_ref[h] + jnp.sum(p, axis=-1, keepdims=True)
                acc_ref[h] = alpha * acc_ref[h] + jnp.dot(
                    p.astype(v.dtype), v, preferred_element_type=jnp.float32
                )
                m_ref[h] = m_new

        @pl.when(ki == pl.num_programs(2) - 1)
        def _():
            inv_l = pl.reciprocal(l_ref[...], approx=True)   # EUP reciprocal
            o_ref[...] = (acc_ref[...] * inv_l).astype(o_ref.dtype)

    return kernel


def pallas_flash_attention(q, k, v, *, head_dim, tq=128, tkv=128):
    """q: (G, n_rep, S, D);  k, v: (G, S, D)  ->  (G, n_rep, S, D).

    G = batch * n_kv_heads.  One grid step handles all n_rep query heads of a
    KV group over a (TQ, TKV) tile; the KV reduction axis is the last grid axis.
    """
    G, n_rep, S, D = q.shape
    assert k.shape == (G, S, D) and v.shape == (G, S, D)
    tq = _pick_tile(S, tq)
    tkv = _pick_tile(S, tkv)
    scale = 1.0 / math.sqrt(head_dim)
    kernel = _make_flash_kernel(scale=scale, n_rep=n_rep, tq=tq, tkv=tkv)
    return pl.pallas_call(
        kernel,
        out_shape=jax.ShapeDtypeStruct((G, n_rep, S, D), q.dtype),
        grid_spec=pltpu.PrefetchScalarGridSpec(
            num_scalar_prefetch=0,
            grid=(G, S // tq, S // tkv),
            in_specs=[
                pl.BlockSpec((None, n_rep, tq, D), lambda g, qi, ki: (g, 0, qi, 0)),
                pl.BlockSpec((None, tkv, D), lambda g, qi, ki: (g, ki, 0)),
                pl.BlockSpec((None, tkv, D), lambda g, qi, ki: (g, ki, 0)),
            ],
            out_specs=pl.BlockSpec(
                (None, n_rep, tq, D), lambda g, qi, ki: (g, 0, qi, 0)
            ),
            scratch_shapes=[
                pltpu.VMEM((n_rep, tq, 1), jnp.float32),   # running max m
                pltpu.VMEM((n_rep, tq, 1), jnp.float32),   # running sum l
                pltpu.VMEM((n_rep, tq, D), jnp.float32),   # output accumulator
            ],
        ),
        compiler_params=pltpu.CompilerParams(
            dimension_semantics=("parallel", "parallel", "arbitrary")
        ),
    )(q, k, v)


# ------------------------------ Plain-JAX glue -------------------------------

def precompute_pos_cis(head_dim, seq_len, theta=1e6):
    """Returns (cos, sin), each (seq_len, head_dim // 2)."""
    freqs = 1.0 / (theta ** (jnp.arange(0, head_dim, 2, dtype=jnp.float32) / head_dim))
    t = jnp.arange(seq_len, dtype=jnp.float32)
    ang = jnp.outer(t, freqs)
    return jnp.cos(ang), jnp.sin(ang)


def apply_rotary_emb(x, cos, sin):
    """x: (B, S, H, D); complex multiply on (even, odd) pairs of the last dim."""
    # TODO(synk): fuse the rotate-half RoPE into the attention kernel's Q/K load
    # (needs an offline even/odd column permutation of wq/wk); kept in JAX here.
    B, S, H, D = x.shape
    xr = x.astype(jnp.float32).reshape(B, S, H, D // 2, 2)
    a, b = xr[..., 0], xr[..., 1]
    c = cos[None, :, None, :]
    s = sin[None, :, None, :]
    out = jnp.stack([a * c - b * s, a * s + b * c], axis=-1).reshape(B, S, H, D)
    return out.astype(x.dtype)


def fuse_qkv_params(params):
    """Concatenate [wq | wk | wv] once so the QKV projection is one matmul."""
    return {
        "wqkv": jnp.concatenate([params["wq"], params["wk"], params["wv"]], axis=1),
        "wo": params["wo"],
    }


def attention_forward(x, params, cos, sin, *, n_heads, n_kv_heads, head_dim):
    """x: (B, S, dim) -> (B, S, dim). Eval mode, causal, no KV cache (mode=0)."""
    B, S, dim = x.shape
    n_rep = n_heads // n_kv_heads
    q_out = n_heads * head_dim
    kv_out = n_kv_heads * head_dim

    # Fused QKV projection: one pallas_call, x read once for all three outputs.
    x2d = x.reshape(B * S, dim)
    qkv = pallas_matmul(x2d, params["wqkv"])                 # (B*S, q+2kv)
    xq = qkv[:, :q_out].reshape(B, S, n_heads, head_dim)
    xk = qkv[:, q_out:q_out + kv_out].reshape(B, S, n_kv_heads, head_dim)
    xv = qkv[:, q_out + kv_out:].reshape(B, S, n_kv_heads, head_dim)

    xq = apply_rotary_emb(xq, cos, sin)
    xk = apply_rotary_emb(xk, cos, sin)

    # GQA layout: group the n_rep query heads that share each KV head.
    # K/V stay at n_kv_heads (no repeat_kv, no HBM duplication); the kernel
    # reads each shared K/V tile once per group.
    q = (
        xq.reshape(B, S, n_kv_heads, n_rep, head_dim)
        .transpose(0, 2, 3, 1, 4)
        .reshape(B * n_kv_heads, n_rep, S, head_dim)
    )
    k = xk.transpose(0, 2, 1, 3).reshape(B * n_kv_heads, S, head_dim)
    v = xv.transpose(0, 2, 1, 3).reshape(B * n_kv_heads, S, head_dim)

    o = pallas_flash_attention(q, k, v, head_dim=head_dim)  # (B*KVH, n_rep, S, D)
    o = (
        o.reshape(B, n_kv_heads, n_rep, S, head_dim)
        .transpose(0, 3, 1, 2, 4)
        .reshape(B * S, n_heads * head_dim)
    )

    out = pallas_matmul(o, params["wo"]).reshape(B, S, dim)
    # attn_dropout / resid_dropout are identity in eval mode (dropout_p = 0).
    # TODO(synk): KV cache (past_key_value/use_cache) and mode=1 attention_intergate
    # paths of the PyTorch module are not exercised here.
    return out


# --------------------------- Pure-JAX reference ------------------------------

def reference_attention(x, params, *, n_heads, n_kv_heads, head_dim, cos, sin):
    B, S, dim = x.shape
    n_rep = n_heads // n_kv_heads
    x2d = x.reshape(B * S, dim)
    xq = (x2d @ params["wq"]).reshape(B, S, n_heads, head_dim)
    xk = (x2d @ params["wk"]).reshape(B, S, n_kv_heads, head_dim)
    xv = (x2d @ params["wv"]).reshape(B, S, n_kv_heads, head_dim)
    xq = apply_rotary_emb(xq, cos, sin)
    xk = apply_rotary_emb(xk, cos, sin)
    xk = jnp.repeat(xk, n_rep, axis=2)
    xv = jnp.repeat(xv, n_rep, axis=2)
    qh = xq.transpose(0, 2, 1, 3)
    kh = xk.transpose(0, 2, 1, 3)
    vh = xv.transpose(0, 2, 1, 3)
    scores = jnp.einsum("bhqd,bhkd->bhqk", qh, kh) / math.sqrt(head_dim)
    mask = jnp.tril(jnp.ones((S, S), dtype=bool))
    scores = jnp.where(mask[None, None], scores, -jnp.inf)
    probs = jax.nn.softmax(scores.astype(jnp.float32), axis=-1).astype(qh.dtype)
    out = jnp.einsum("bhqk,bhkd->bhqd", probs, vh)
    out = out.transpose(0, 2, 1, 3).reshape(B * S, n_heads * head_dim)
    return (out @ params["wo"]).reshape(B, S, dim)


# ---------------------------------- Main -------------------------------------

if __name__ == "__main__":
    # Small config consistent with the module: dim=32, n_heads=4, n_kv_heads=2.
    B, S, dim = 2, 8, 32
    n_heads, n_kv_heads = 4, 2
    head_dim = dim // n_heads

    key = jax.random.PRNGKey(0)
    kx, kq, kk, kv, ko = jax.random.split(key, 5)

    x = jax.random.normal(kx, (B, S, dim), dtype=jnp.float32)

    # nn.Linear(in, out, bias=False) -> store weights as (in, out) for x @ W.
    init = lambda k, shape: (0.02 * jax.random.normal(k, shape)).astype(jnp.float32)
    params = {
        "wq": init(kq, (dim, n_heads * head_dim)),
        "wk": init(kk, (dim, n_kv_heads * head_dim)),
        "wv": init(kv, (dim, n_kv_heads * head_dim)),
        "wo": init(ko, (n_heads * head_dim, dim)),
    }
    fused_params = fuse_qkv_params(params)                   # one-time QKV fusion

    cos, sin = precompute_pos_cis(head_dim, S)

    fwd = jax.jit(
        functools.partial(
            attention_forward,
            n_heads=n_heads, n_kv_heads=n_kv_heads, head_dim=head_dim,
        )
    )
    out = fwd(x, fused_params, cos, sin)
    out = jax.block_until_ready(out)
    assert out.shape == (B, S, dim), out.shape
    assert bool(jnp.all(jnp.isfinite(out)))

    ref = reference_attention(
        x, params,
        n_heads=n_heads, n_kv_heads=n_kv_heads, head_dim=head_dim,
        cos=cos, sin=sin,
    )
    ref = jax.block_until_ready(ref)
    assert bool(jnp.allclose(out, ref, atol=2e-3, rtol=2e-2)), (
        float(jnp.max(jnp.abs(out - ref)))
    )

    print("KERNEL_OK")
</pallas_src>

<mosaic_0001>
module attributes {stable_mosaic.version = 11 : i64} {
  func.func @_matmul_kernel(%arg0: i32, %arg1: i32, %arg2: i32, %arg3: memref<16x32xf32, #tpu.memory_space<vmem>>, %arg4: memref<32x64xf32, #tpu.memory_space<vmem>>, %arg5: memref<16x64xf32, #tpu.memory_space<vmem>>, %arg6: memref<16x64xf32, #tpu.memory_space<vmem>>) attributes {dimension_semantics = [#tpu.dimension_semantics<parallel>, #tpu.dimension_semantics<parallel>, #tpu.dimension_semantics<arbitrary>], iteration_bounds = array<i64: 1, 1, 1>, scalar_prefetch = 0 : i64, scratch_operands = 1 : i64, tpu.core_type = #tpu.core_type<tc>, window_params = [{transform_indices = @transform_0, window_bounds = array<i64: 16, 32>}, {transform_indices = @transform_1, window_bounds = array<i64: 32, 64>}, {transform_indices = @transform_2, window_bounds = array<i64: 16, 64>}]} {
    %c0_i32 = arith.constant 0 : i32
    %0 = arith.cmpi eq, %arg2, %c0_i32 : i32
    %1 = arith.extui %0 : i1 to i32
    %c0_i32_0 = arith.constant 0 : i32
    %2 = arith.cmpi ne, %1, %c0_i32_0 : i32
    scf.if %2 {
      %cst_10 = arith.constant 0.000000e+00 : f32
      %12 = vector.broadcast %cst_10 : f32 to vector<16x64xf32>
      %c0_11 = arith.constant 0 : index
      %c0_12 = arith.constant 0 : index
      %13 = vector.load %arg6[%c0_11, %c0_12] : memref<16x64xf32, #tpu.memory_space<vmem>>, vector<16x64xf32>
      tpu.vector_store %arg6[%c0_11, %c0_12], %12 {strides = array<i32>} : memref<16x64xf32, #tpu.memory_space<vmem>>, vector<16x64xf32>,
    } else {
    }
    %c0 = arith.constant 0 : index
    %c0_1 = arith.constant 0 : index
    %3 = vector.load %arg6[%c0, %c0_1] : memref<16x64xf32, #tpu.memory_space<vmem>>, vector<16x64xf32>
    %c0_2 = arith.constant 0 : index
    %c0_3 = arith.constant 0 : index
    %4 = vector.load %arg3[%c0_2, %c0_3] : memref<16x32xf32, #tpu.memory_space<vmem>>, vector<16x32xf32>
    %c0_4 = arith.constant 0 : index
    %c0_5 = arith.constant 0 : index
    %5 = vector.load %arg4[%c0_4, %c0_5] : memref<32x64xf32, #tpu.memory_space<vmem>>, vector<32x64xf32>
    %cst = arith.constant dense<0.000000e+00> : vector<16x64xf32>
    %6 = tpu.matmul %4, %5, %cst {dimension_numbers = #tpu.dot_dimension_numbers<[1], [0], [0], [1], [0, 0, 1, 1], [], []>} : vector<16x32xf32>, vector<32x64xf32>, vector<16x64xf32> -> vector<16x64xf32>
    %7 = arith.addf %3, %6 : vector<16x64xf32>
    %c0_6 = arith.constant 0 : index
    %c0_7 = arith.constant 0 : index
    %8 = vector.load %arg6[%c0_6, %c0_7] : memref<16x64xf32, #tpu.memory_space<vmem>>, vector<16x64xf32>
    tpu.vector_store %arg6[%c0_6, %c0_7], %7 {strides = array<i32>} : memref<16x64xf32, #tpu.memory_space<vmem>>, vector<16x64xf32>,
    %c0_i32_8 = arith.constant 0 : i32
    %9 = arith.cmpi eq, %arg2, %c0_i32_8 : i32
    %10 = arith.extui %9 : i1 to i32
    %c0_i32_9 = arith.constant 0 : i32
    %11 = arith.cmpi ne, %10, %c0_i32_9 : i32
    scf.if %11 {
      %c0_10 = arith.constant 0 : index
      %c0_11 = arith.constant 0 : index
      %12 = vector.load %arg6[%c0_10, %c0_11] : memref<16x64xf32, #tpu.memory_space<vmem>>, vector<16x64xf32>
      %c0_12 = arith.constant 0 : index
      %c0_13 = arith.constant 0 : index
      %13 = vector.load %arg5[%c0_12, %c0_13] : memref<16x64xf32, #tpu.memory_space<vmem>>, vector<16x64xf32>
      tpu.vector_store %arg5[%c0_12, %c0_13], %12 {strides = array<i32>} : memref<16x64xf32, #tpu.memory_space<vmem>>, vector<16x64xf32>,
    } else {
    }
    return
  }
  func.func @transform_0(%arg0: i32, %arg1: i32, %arg2: i32) -> (i32, i32) {
    %c0_i32 = arith.constant 0 : i32
    return %arg0, %arg2 : i32, i32
  }
  func.func @transform_1(%arg0: i32, %arg1: i32, %arg2: i32) -> (i32, i32) {
    %c0_i32 = arith.constant 0 : i32
    return %arg2, %arg1 : i32, i32
  }
  func.func @transform_2(%arg0: i32, %arg1: i32, %arg2: i32) -> (i32, i32) {
    %c0_i32 = arith.constant 0 : i32
    return %arg0, %arg1 : i32, i32
  }
}

module attributes {stable_mosaic.version = 11 : i64} {
  func.func @kernel(%arg0: i32, %arg1: i32, %arg2: i32, %arg3: memref<1x2x8x8xf32, #tpu.memory_space<vmem>>, %arg4: memref<1x8x8xf32, #tpu.memory_space<vmem>>, %arg5: memref<1x8x8xf32, #tpu.memory_space<vmem>>, %arg6: memref<1x2x8x8xf32, #tpu.memory_space<vmem>>, %arg7: memref<2x8x1xf32, #tpu.memory_space<vmem>>, %arg8: memref<2x8x1xf32, #tpu.memory_space<vmem>>, %arg9: memref<2x8x8xf32, #tpu.memory_space<vmem>>) attributes {dimension_semantics = [#tpu.dimension_semantics<parallel>, #tpu.dimension_semantics<parallel>, #tpu.dimension_semantics<arbitrary>], iteration_bounds = array<i64: 4, 1, 1>, scalar_prefetch = 0 : i64, scratch_operands = 3 : i64, tpu.core_type = #tpu.core_type<tc>, window_params = [{transform_indices = @transform_0, window_bounds = array<i64: 1, 2, 8, 8>}, {transform_indices = @transform_1, window_bounds = array<i64: 1, 8, 8>}, {transform_indices = @transform_2, window_bounds = array<i64: 1, 8, 8>}, {transform_indices = @transform_3, window_bounds = array<i64: 1, 2, 8, 8>}]} {
    %c0_i32 = arith.constant 0 : i32
    %0 = arith.cmpi eq, %arg2, %c0_i32 : i32
    %1 = arith.extui %0 : i1 to i32
    %c0_i32_0 = arith.constant 0 : i32
    %2 = arith.cmpi ne, %1, %c0_i32_0 : i32
    scf.if %2 {
      %cst = arith.constant 0xFF800000 : f32
      %12 = vector.broadcast %cst : f32 to vector<2x8x1xf32>
      %c0 = arith.constant 0 : index
      %c0_5 = arith.constant 0 : index
      %c0_6 = arith.constant 0 : index
      %13 = vector.load %arg7[%c0, %c0_5, %c0_6] : memref<2x8x1xf32, #tpu.memory_space<vmem>>, vector<2x8x1xf32>
      tpu.vector_store %arg7[%c0, %c0_5, %c0_6], %12 {strides = array<i32>} : memref<2x8x1xf32, #tpu.memory_space<vmem>>, vector<2x8x1xf32>,
      %cst_7 = arith.constant 0.000000e+00 : f32
      %14 = vector.broadcast %cst_7 : f32 to vector<2x8x1xf32>
      %c0_8 = arith.constant 0 : index
      %c0_9 = arith.constant 0 : index
      %c0_10 = arith.constant 0 : index
      %15 = vector.load %arg8[%c0_8, %c0_9, %c0_10] : memref<2x8x1xf32, #tpu.memory_space<vmem>>, vector<2x8x1xf32>
      tpu.vector_store %arg8[%c0_8, %c0_9, %c0_10], %14 {strides = array<i32>} : memref<2x8x1xf32, #tpu.memory_space<vmem>>, vector<2x8x1xf32>,
      %cst_11 = arith.constant 0.000000e+00 : f32
      %16 = vector.broadcast %cst_11 : f32 to vector<2x8x8xf32>
      %c0_12 = arith.constant 0 : index
      %c0_13 = arith.constant 0 : index
      %c0_14 = arith.constant 0 : index
      %17 = vector.load %arg9[%c0_12, %c0_13, %c0_14] : memref<2x8x8xf32, #tpu.memory_space<vmem>>, vector<2x8x8xf32>
      tpu.vector_store %arg9[%c0_12, %c0_13, %c0_14], %16 {strides = array<i32>} : memref<2x8x8xf32, #tpu.memory_space<vmem>>, vector<2x8x8xf32>,
    } else {
    }
    %c8_i32 = arith.constant 8 : i32
    %3 = arith.muli %arg2, %c8_i32 : i32
    %c8_i32_1 = arith.constant 8 : i32
    %4 = arith.muli %arg1, %c8_i32_1 : i32
    %c7_i32 = arith.constant 7 : i32
    %5 = arith.addi %4, %c7_i32 : i32
    %6 = arith.cmpi sle, %3, %5 : i32
    %7 = arith.extui %6 : i1 to i32
    %c0_i32_2 = arith.constant 0 : i32
    %8 = arith.cmpi ne, %7, %c0_i32_2 : i32
    scf.if %8 {
      %c0 = arith.constant 0 : index
      %c0_5 = arith.constant 0 : index
      %c0_6 = arith.constant 0 : index
      %12 = vector.load %arg4[%c0, %c0_5, %c0_6] : memref<1x8x8xf32, #tpu.memory_space<vmem>>, vector<1x8x8xf32>
      %13 = vector.shape_cast %12 : vector<1x8x8xf32> to vector<8x8xf32>
      %c0_7 = arith.constant 0 : index
      %c0_8 = arith.constant 0 : index
      %c0_9 = arith.constant 0 : index
      %14 = vector.load %arg5[%c0_7, %c0_8, %c0_9] : memref<1x8x8xf32, #tpu.memory_space<vmem>>, vector<1x8x8xf32>
      %15 = vector.shape_cast %14 : vector<1x8x8xf32> to vector<8x8xf32>
      %c0_10 = arith.constant 0 : index
      %c0_11 = arith.constant 0 : index
      %c0_12 = arith.constant 0 : index
      %c0_13 = arith.constant 0 : index
      %16 = vector.load %arg3[%c0_10, %c0_11, %c0_12, %c0_13] : memref<1x2x8x8xf32, #tpu.memory_space<vmem>>, vector<1x2x8x8xf32>
      %17 = vector.shape_cast %16 : vector<1x2x8x8xf32> to vector<2x8x8xf32>
      %cst = arith.constant 0.353553385 : f32
      %18 = vector.broadcast %cst : f32 to vector<2x8x8xf32>
      %19 = arith.mulf %17, %18 : vector<2x8x8xf32>
      %c8_i32_14 = arith.constant 8 : i32
      %20 = arith.muli %arg1, %c8_i32_14 : i32
      %21 = tpu.iota {dimensions = array<i32: 0>} : vector<8x8xi32>
      %22 = vector.broadcast %20 : i32 to vector<8x8xi32>
      %23 = arith.addi %22, %21 : vector<8x8xi32>
      %c8_i32_15 = arith.constant 8 : i32
      %24 = arith.muli %arg2, %c8_i32_15 : i32
      %25 = tpu.iota {dimensions = array<i32: 1>} : vector<8x8xi32>
      %26 = vector.broadcast %24 : i32 to vector<8x8xi32>
      %27 = arith.addi %26, %25 : vector<8x8xi32>
      %28 = arith.cmpi sle, %27, %23 : vector<8x8xi32>
      %29 = vector.extract_strided_slice %19 {offsets = [0, 0, 0], sizes = [1, 8, 8], strides = [1, 1, 1]} : vector<2x8x8xf32> to vector<1x8x8xf32>
      %30 = vector.shape_cast %29 : vector<1x8x8xf32> to vector<8x8xf32>
      %cst_16 = arith.constant dense<0.000000e+00> : vector<8x8xf32>
      %31 = tpu.matmul %30, %13, %cst_16 {dimension_numbers = #tpu.dot_dimension_numbers<[1], [1], [0], [0], [0, 0, 1, 0], [], []>} : vector<8x8xf32>, vector<8x8xf32>, vector<8x8xf32> -> vector<8x8xf32>
      %cst_17 = arith.constant 0xFF800000 : f32
      %32 = vector.broadcast %cst_17 : f32 to vector<8x8xf32>
      %33 = arith.select %28, %31, %32 : vector<8x8xi1>, vector<8x8xf32>
      %c0_18 = arith.constant 0 : index
      %c0_19 = arith.constant 0 : index
      %c0_20 = arith.constant 0 : index
      %34 = vector.load %arg7[%c0_18, %c0_19, %c0_20] : memref<2x8x1xf32, #tpu.memory_space<vmem>>, vector<1x8x1xf32>
      %35 = vector.shape_cast %34 : vector<1x8x1xf32> to vector<8x1xf32>
      %cst_21 = arith.constant dense<0xFF800000> : vector<8xf32>
      %36 = vector.multi_reduction <maximumf>, %33, %cst_21 [1] : vector<8x8xf32> to vector<8xf32>
      %37 = vector.shape_cast %36 : vector<8xf32> to vector<8x1xf32>
      %38 = arith.maximumf %35, %37 : vector<8x1xf32>
      %39 = arith.subf %35, %38 : vector<8x1xf32>
      %40 = math.exp %39 : vector<8x1xf32>
      %41 = vector.broadcast %38 : vector<8x1xf32> to vector<8x8xf32>
      %42 = arith.subf %33, %41 : vector<8x8xf32>
      %43 = math.exp %42 : vector<8x8xf32>
      %c0_22 = arith.constant 0 : index
      %c0_23 = arith.constant 0 : index
      %c0_24 = arith.constant 0 : index
      %44 = vector.load %arg8[%c0_22, %c0_23, %c0_24] : memref<2x8x1xf32, #tpu.memory_space<vmem>>, vector<1x8x1xf32>
      %45 = vector.shape_cast %44 : vector<1x8x1xf32> to vector<8x1xf32>
      %46 = arith.mulf %40, %45 : vector<8x1xf32>
      %cst_25 = arith.constant dense<0.000000e+00> : vector<8xf32>
      %47 = vector.multi_reduction <add>, %43, %cst_25 [1] : vector<8x8xf32> to vector<8xf32>
      %48 = vector.shape_cast %47 : vector<8xf32> to vector<8x1xf32>
      %49 = arith.addf %46, %48 : vector<8x1xf32>
      %c0_26 = arith.constant 0 : index
      %c0_27 = arith.constant 0 : index
      %c0_28 = arith.constant 0 : index
      %50 = vector.load %arg8[%c0_26, %c0_27, %c0_28] : memref<2x8x1xf32, #tpu.memory_space<vmem>>, vector<1x8x1xf32>
      %51 = vector.shape_cast %50 : vector<1x8x1xf32> to vector<8x1xf32>
      %52 = vector.shape_cast %49 : vector<8x1xf32> to vector<1x8x1xf32>
      tpu.vector_store %arg8[%c0_26, %c0_27, %c0_28], %52 {strides = array<i32>} : memref<2x8x1xf32, #tpu.memory_space<vmem>>, vector<1x8x1xf32>,
      %c0_29 = arith.constant 0 : index
      %c0_30 = arith.constant 0 : index
      %c0_31 = arith.constant 0 : index
      %53 = vector.load %arg9[%c0_29, %c0_30, %c0_31] : memref<2x8x8xf32, #tpu.memory_space<vmem>>, vector<1x8x8xf32>
      %54 = vector.shape_cast %53 : vector<1x8x8xf32> to vector<8x8xf32>
      %55 = vector.broadcast %40 : vector<8x1xf32> to vector<8x8xf32>
      %56 = arith.mulf %55, %54 : vector<8x8xf32>
      %cst_32 = arith.constant dense<0.000000e+00> : vector<8x8xf32>
      %57 = tpu.matmul %43, %15, %cst_32 {dimension_numbers = #tpu.dot_dimension_numbers<[1], [0], [0], [1], [0, 0, 1, 1], [], []>} : vector<8x8xf32>, vector<8x8xf32>, vector<8x8xf32> -> vector<8x8xf32>
      %58 = arith.addf %56, %57 : vector<8x8xf32>
      %c0_33 = arith.constant 0 : index
      %c0_34 = arith.constant 0 : index
      %c0_35 = arith.constant 0 : index
      %59 = vector.load %arg9[%c0_33, %c0_34, %c0_35] : memref<2x8x8xf32, #tpu.memory_space<vmem>>, vector<1x8x8xf32>
      %60 = vector.shape_cast %59 : vector<1x8x8xf32> to vector<8x8xf32>
      %61 = vector.shape_cast %58 : vector<8x8xf32> to vector<1x8x8xf32>
      tpu.vector_store %arg9[%c0_33, %c0_34, %c0_35], %61 {strides = array<i32>} : memref<2x8x8xf32, #tpu.memory_space<vmem>>, vector<1x8x8xf32>,
      %c0_36 = arith.constant 0 : index
      %c0_37 = arith.constant 0 : index
      %c0_38 = arith.constant 0 : index
      %62 = vector.load %arg7[%c0_36, %c0_37, %c0_38] : memref<2x8x1xf32, #tpu.memory_space<vmem>>, vector<1x8x1xf32>
      %63 = vector.shape_cast %62 : vector<1x8x1xf32> to vector<8x1xf32>
      %64 = vector.shape_cast %38 : vector<8x1xf32> to vector<1x8x1xf32>
      tpu.vector_store %arg7[%c0_36, %c0_37, %c0_38], %64 {strides = array<i32>} : memref<2x8x1xf32, #tpu.memory_space<vmem>>, vector<1x8x1xf32>,
      %65 = vector.extract_strided_slice %19 {offsets = [1, 0, 0], sizes = [1, 8, 8], strides = [1, 1, 1]} : vector<2x8x8xf32> to vector<1x8x8xf32>
      %66 = vector.shape_cast %65 : vector<1x8x8xf32> to vector<8x8xf32>
      %cst_39 = arith.constant dense<0.000000e+00> : vector<8x8xf32>
      %67 = tpu.matmul %66, %13, %cst_39 {dimension_numbers = #tpu.dot_dimension_numbers<[1], [1], [0], [0], [0, 0, 1, 0], [], []>} : vector<8x8xf32>, vector<8x8xf32>, vector<8x8xf32> -> vector<8x8xf32>
      %cst_40 = arith.constant 0xFF800000 : f32
      %68 = vector.broadcast %cst_40 : f32 to vector<8x8xf32>
      %69 = arith.select %28, %67, %68 : vector<8x8xi1>, vector<8x8xf32>
      %c1 = arith.constant 1 : index
      %c0_41 = arith.constant 0 : index
      %c0_42 = arith.constant 0 : index
      %70 = vector.load %arg7[%c1, %c0_41, %c0_42] : memref<2x8x1xf32, #tpu.memory_space<vmem>>, vector<1x8x1xf32>
      %71 = vector.shape_cast %70 : vector<1x8x1xf32> to vector<8x1xf32>
      %cst_43 = arith.constant dense<0xFF800000> : vector<8xf32>
      %72 = vector.multi_reduction <maximumf>, %69, %cst_43 [1] : vector<8x8xf32> to vector<8xf32>
      %73 = vector.shape_cast %72 : vector<8xf32> to vector<8x1xf32>
      %74 = arith.maximumf %71, %73 : vector<8x1xf32>
      %75 = arith.subf %71, %74 : vector<8x1xf32>
      %76 = math.exp %75 : vector<8x1xf32>
      %77 = vector.broadcast %74 : vector<8x1xf32> to vector<8x8xf32>
      %78 = arith.subf %69, %77 : vector<8x8xf32>
      %79 = math.exp %78 : vector<8x8xf32>
      %c1_44 = arith.constant 1 : index
      %c0_45 = arith.constant 0 : index
      %c0_46 = arith.constant 0 : index
      %80 = vector.load %arg8[%c1_44, %c0_45, %c0_46] : memref<2x8x1xf32, #tpu.memory_space<vmem>>, vector<1x8x1xf32>
      %81 = vector.shape_cast %80 : vector<1x8x1xf32> to vector<8x1xf32>
      %82 = arith.mulf %76, %81 : vector<8x1xf32>
      %cst_47 = arith.constant dense<0.000000e+00> : vector<8xf32>
      %83 = vector.multi_reduction <add>, %79, %cst_47 [1] : vector<8x8xf32> to vector<8xf32>
      %84 = vector.shape_cast %83 : vector<8xf32> to vector<8x1xf32>
      %85 = arith.addf %82, %84 : vector<8x1xf32>
      %c1_48 = arith.constant 1 : index
      %c0_49 = arith.constant 0 : index
      %c0_50 = arith.constant 0 : index
      %86 = vector.load %arg8[%c1_48, %c0_49, %c0_50] : memref<2x8x1xf32, #tpu.memory_space<vmem>>, vector<1x8x1xf32>
      %87 = vector.shape_cast %86 : vector<1x8x1xf32> to vector<8x1xf32>
      %88 = vector.shape_cast %85 : vector<8x1xf32> to vector<1x8x1xf32>
      tpu.vector_store %arg8[%c1_48, %c0_49, %c0_50], %88 {strides = array<i32>} : memref<2x8x1xf32, #tpu.memory_space<vmem>>, vector<1x8x1xf32>,
      %c1_51 = arith.constant 1 : index
      %c0_52 = arith.constant 0 : index
      %c0_53 = arith.constant 0 : index
      %89 = vector.load %arg9[%c1_51, %c0_52, %c0_53] : memref<2x8x8xf32, #tpu.memory_space<vmem>>, vector<1x8x8xf32>
      %90 = vector.shape_cast %89 : vector<1x8x8xf32> to vector<8x8xf32>
      %91 = vector.broadcast %76 : vector<8x1xf32> to vector<8x8xf32>
      %92 = arith.mulf %91, %90 : vector<8x8xf32>
      %cst_54 = arith.constant dense<0.000000e+00> : vector<8x8xf32>
      %93 = tpu.matmul %79, %15, %cst_54 {dimension_numbers = #tpu.dot_dimension_numbers<[1], [0], [0], [1], [0, 0, 1, 1], [], []>} : vector<8x8xf32>, vector<8x8xf32>, vector<8x8xf32> -> vector<8x8xf32>
      %94 = arith.addf %92, %93 : vector<8x8xf32>
      %c1_55 = arith.constant 1 : index
      %c0_56 = arith.constant 0 : index
      %c0_57 = arith.constant 0 : index
      %95 = vector.load %arg9[%c1_55, %c0_56, %c0_57] : memref<2x8x8xf32, #tpu.memory_space<vmem>>, vector<1x8x8xf32>
      %96 = vector.shape_cast %95 : vector<1x8x8xf32> to vector<8x8xf32>
      %97 = vector.shape_cast %94 : vector<8x8xf32> to vector<1x8x8xf32>
      tpu.vector_store %arg9[%c1_55, %c0_56, %c0_57], %97 {strides = array<i32>} : memref<2x8x8xf32, #tpu.memory_space<vmem>>, vector<1x8x8xf32>,
      %c1_58 = arith.constant 1 : index
      %c0_59 = arith.constant 0 : index
      %c0_60 = arith.constant 0 : index
      %98 = vector.load %arg7[%c1_58, %c0_59, %c0_60] : memref<2x8x1xf32, #tpu.memory_space<vmem>>, vector<1x8x1xf32>
      %99 = vector.shape_cast %98 : vector<1x8x1xf32> to vector<8x1xf32>
      %100 = vector.shape_cast %74 : vector<8x1xf32> to vector<1x8x1xf32>
      tpu.vector_store %arg7[%c1_58, %c0_59, %c0_60], %100 {strides = array<i32>} : memref<2x8x1xf32, #tpu.memory_space<vmem>>, vector<1x8x1xf32>,
    } else {
    }
    %c0_i32_3 = arith.constant 0 : i32
    %9 = arith.cmpi eq, %arg2, %c0_i32_3 : i32
    %10 = arith.extui %9 : i1 to i32
    %c0_i32_4 = arith.constant 0 : i32
    %11 = arith.cmpi ne, %10, %c0_i32_4 : i32
    scf.if %11 {
      %c0 = arith.constant 0 : index
      %c0_5 = arith.constant 0 : index
      %c0_6 = arith.constant 0 : index
      %12 = vector.load %arg8[%c0, %c0_5, %c0_6] : memref<2x8x1xf32, #tpu.memory_space<vmem>>, vector<2x8x1xf32>
      %13 = tpu.reciprocal %12 {approx = true} : vector<2x8x1xf32> -> vector<2x8x1xf32>
      %c0_7 = arith.constant 0 : index
      %c0_8 = arith.constant 0 : index
      %c0_9 = arith.constant 0 : index
      %14 = vector.load %arg9[%c0_7, %c0_8, %c0_9] : memref<2x8x8xf32, #tpu.memory_space<vmem>>, vector<2x8x8xf32>
      %15 = vector.broadcast %13 : vector<2x8x1xf32> to vector<2x8x8xf32>
      %16 = arith.mulf %14, %15 : vector<2x8x8xf32>
      %c0_10 = arith.constant 0 : index
      %c0_11 = arith.constant 0 : index
      %c0_12 = arith.constant 0 : index
      %c0_13 = arith.constant 0 : index
      %17 = vector.load %arg6[%c0_10, %c0_11, %c0_12, %c0_13] : memref<1x2x8x8xf32, #tpu.memory_space<vmem>>, vector<1x2x8x8xf32>
      %18 = vector.shape_cast %17 : vector<1x2x8x8xf32> to vector<2x8x8xf32>
      %19 = vector.shape_cast %16 : vector<2x8x8xf32> to vector<1x2x8x8xf32>
      tpu.vector_store %arg6[%c0_10, %c0_11, %c0_12, %c0_13], %19 {strides = array<i32>} : memref<1x2x8x8xf32, #tpu.memory_space<vmem>>, vector<1x2x8x8xf32>,
    } else {
    }
    return
  }
  func.func @transform_0(%arg0: i32, %arg1: i32, %arg2: i32) -> (i32, i32, i32, i32) {
    %c0_i32 = arith.constant 0 : i32
    %c0_i32_0 = arith.constant 0 : i32
    %c0_i32_1 = arith.constant 0 : i32
    return %arg0, %c0_i32, %arg1, %c0_i32_0 : i32, i32, i32, i32
  }
  func.func @transform_1(%arg0: i32, %arg1: i32, %arg2: i32) -> (i32, i32, i32) {
    %c0_i32 = arith.constant 0 : i32
    %c0_i32_0 = arith.constant 0 : i32
    return %arg0, %arg2, %c0_i32 : i32, i32, i32
  }
  func.func @transform_2(%arg0: i32, %arg1: i32, %arg2: i32) -> (i32, i32, i32) {
    %c0_i32 = arith.constant 0 : i32
    %c0_i32_0 = arith.constant 0 : i32
    return %arg0, %arg2, %c0_i32 : i32, i32, i32
  }
  func.func @transform_3(%arg0: i32, %arg1: i32, %arg2: i32) -> (i32, i32, i32, i32) {
    %c0_i32 = arith.constant 0 : i32
    %c0_i32_0 = arith.constant 0 : i32
    %c0_i32_1 = arith.constant 0 : i32
    return %arg0, %c0_i32, %arg1, %c0_i32_0 : i32, i32, i32, i32
  }
}

module attributes {stable_mosaic.version = 11 : i64} {
  func.func @_matmul_kernel(%arg0: i32, %arg1: i32, %arg2: i32, %arg3: memref<16x32xf32, #tpu.memory_space<vmem>>, %arg4: memref<32x32xf32, #tpu.memory_space<vmem>>, %arg5: memref<16x32xf32, #tpu.memory_space<vmem>>, %arg6: memref<16x32xf32, #tpu.memory_space<vmem>>) attributes {dimension_semantics = [#tpu.dimension_semantics<parallel>, #tpu.dimension_semantics<parallel>, #tpu.dimension_semantics<arbitrary>], iteration_bounds = array<i64: 1, 1, 1>, scalar_prefetch = 0 : i64, scratch_operands = 1 : i64, tpu.core_type = #tpu.core_type<tc>, window_params = [{transform_indices = @transform_0, window_bounds = array<i64: 16, 32>}, {transform_indices = @transform_1, window_bounds = array<i64: 32, 32>}, {transform_indices = @transform_2, window_bounds = array<i64: 16, 32>}]} {
    %c0_i32 = arith.constant 0 : i32
    %0 = arith.cmpi eq, %arg2, %c0_i32 : i32
    %1 = arith.extui %0 : i1 to i32
    %c0_i32_0 = arith.constant 0 : i32
    %2 = arith.cmpi ne, %1, %c0_i32_0 : i32
    scf.if %2 {
      %cst_10 = arith.constant 0.000000e+00 : f32
      %12 = vector.broadcast %cst_10 : f32 to vector<16x32xf32>
      %c0_11 = arith.constant 0 : index
      %c0_12 = arith.constant 0 : index
      %13 = vector.load %arg6[%c0_11, %c0_12] : memref<16x32xf32, #tpu.memory_space<vmem>>, vector<16x32xf32>
      tpu.vector_store %arg6[%c0_11, %c0_12], %12 {strides = array<i32>} : memref<16x32xf32, #tpu.memory_space<vmem>>, vector<16x32xf32>,
    } else {
    }
    %c0 = arith.constant 0 : index
    %c0_1 = arith.constant 0 : index
    %3 = vector.load %arg6[%c0, %c0_1] : memref<16x32xf32, #tpu.memory_space<vmem>>, vector<16x32xf32>
    %c0_2 = arith.constant 0 : index
    %c0_3 = arith.constant 0 : index
    %4 = vector.load %arg3[%c0_2, %c0_3] : memref<16x32xf32, #tpu.memory_space<vmem>>, vector<16x32xf32>
    %c0_4 = arith.constant 0 : index
    %c0_5 = arith.constant 0 : index
    %5 = vector.load %arg4[%c0_4, %c0_5] : memref<32x32xf32, #tpu.memory_space<vmem>>, vector<32x32xf32>
    %cst = arith.constant dense<0.000000e+00> : vector<16x32xf32>
    %6 = tpu.matmul %4, %5, %cst {dimension_numbers = #tpu.dot_dimension_numbers<[1], [0], [0], [1], [0, 0, 1, 1], [], []>} : vector<16x32xf32>, vector<32x32xf32>, vector<16x32xf32> -> vector<16x32xf32>
    %7 = arith.addf %3, %6 : vector<16x32xf32>
    %c0_6 = arith.constant 0 : index
    %c0_7 = arith.constant 0 : index
    %8 = vector.load %arg6[%c0_6, %c0_7] : memref<16x32xf32, #tpu.memory_space<vmem>>, vector<16x32xf32>
    tpu.vector_store %arg6[%c0_6, %c0_7], %7 {strides = array<i32>} : memref<16x32xf32, #tpu.memory_space<vmem>>, vector<16x32xf32>,
    %c0_i32_8 = arith.constant 0 : i32
    %9 = arith.cmpi eq, %arg2, %c0_i32_8 : i32
    %10 = arith.extui %9 : i1 to i32
    %c0_i32_9 = arith.constant 0 : i32
    %11 = arith.cmpi ne, %10, %c0_i32_9 : i32
    scf.if %11 {
      %c0_10 = arith.constant 0 : index
      %c0_11 = arith.constant 0 : index
      %12 = vector.load %arg6[%c0_10, %c0_11] : memref<16x32xf32, #tpu.memory_space<vmem>>, vector<16x32xf32>
      %c0_12 = arith.constant 0 : index
      %c0_13 = arith.constant 0 : index
      %13 = vector.load %arg5[%c0_12, %c0_13] : memref<16x32xf32, #tpu.memory_space<vmem>>, vector<16x32xf32>
      tpu.vector_store %arg5[%c0_12, %c0_13], %12 {strides = array<i32>} : memref<16x32xf32, #tpu.memory_space<vmem>>, vector<16x32xf32>,
    } else {
    }
    return
  }
  func.func @transform_0(%arg0: i32, %arg1: i32, %arg2: i32) -> (i32, i32) {
    %c0_i32 = arith.constant 0 : i32
    return %arg0, %arg2 : i32, i32
  }
  func.func @transform_1(%arg0: i32, %arg1: i32, %arg2: i32) -> (i32, i32) {
    %c0_i32 = arith.constant 0 : i32
    return %arg2, %arg1 : i32, i32
  }
  func.func @transform_2(%arg0: i32, %arg1: i32, %arg2: i32) -> (i32, i32) {
    %c0_i32 = arith.constant 0 : i32
    return %arg0, %arg1 : i32, i32
  }
}

</mosaic_0001>

<llo_original>
// kernel: attention_forward.3
$region0: #{attention_forward.3}
  #allocation0 [shape = 'u32[]', space=smem, size = 0x4, offset = 0x4, fixed_abs, tag = 'smem constant byte address 0x4 - core index']
  #allocation1 [shape = 'u32[144,128]{1,0:T(1,128)}', space=vmem, size = 0x12000, scoped, tag = 'internal scratch']
  #allocation2 [shape = 'f32[16,64]{1,0:T(8,128)}', space=vmem, size = 0x2000, scoped, tag = 'scratch operand']
  %s0 = inlined_call_operand.hbm [shape: f32[16,32], index: 0, kind: input, shape index: {}]
  %s1 = inlined_call_operand.hbm [shape: f32[32,64], index: 1, kind: input, shape index: {}]
  %s2 = inlined_call_operand.vmem [shape: f32[16,64], index: 2, kind: output, shape index: {}]
  %s3 = sld [smem:[#allocation0]]
  $region34: #{attention_forward.3} parent=0
    _
  %s5 = ssub.s32 1, %s3
  %s6 = scalar_select 0, %s5, %s3
  $region1: #{attention_forward.3} parent=0
    #allocation3 [shape = 'u8[8192]{0}', space=vmem, size = 0x2000, scoped, tag = 'input window, operand 0, single buffered']
    #allocation4 [shape = 's32[1]{0}', space=sflag, size = 0x4, scoped, tag = 'scoped memory for attention_forward.3']
    #allocation5 [shape = 'u8[16384]{0}', space=vmem, size = 0x4000, scoped, tag = 'input window, operand 1, single buffered']
    #allocation6 [shape = 's32[1]{0}', space=sflag, size = 0x4, scoped, tag = 'scoped memory for attention_forward.3']
    %7 = vsyncpa [#allocation4], 0
    %8 = vsyncpa [#allocation6], 0
    // Predicated region
    $region2: #{attention_forward.3} parent=1 // pred_check
      _
    $region3: #{attention_forward.3} parent=1 // pred_check_branch
      %10 = sbr.rel (0) target = $region5
    $region4: #{attention_forward.3} parent=1 // pred_region
      %s12 = ssub.s32 256, 256
      %13 = vsyncadd [#allocation4], %s12
      %s14 = sshll.u32 [#allocation3], 4
      %s15 = int_to_ptr.vmem [resolvable:$true] %s14
      %20 = dma.hbm_to_vmem [thread:$0]  %s0, 256, %s15, [#allocation4], 128, 128, 8
    $region5: #{attention_forward.3} parent=1 // pred_fallthru
      _
    // Predicated region
    $region6: #{attention_forward.3} parent=1 // pred_check
      _
    $region7: #{attention_forward.3} parent=1 // pred_check_branch
      %22 = sbr.rel (0) target = $region9
    $region8: #{attention_forward.3} parent=1 // pred_region
      %s24 = ssub.s32 512, 512
      %25 = vsyncadd [#allocation6], %s24
      %s26 = sshll.u32 [#allocation5], 4
      %s27 = int_to_ptr.vmem [resolvable:$true] %s26
      %32 = dma.hbm_to_vmem [thread:$0]  %s1, 512, %s27, [#allocation6], 128, 128, 8
    $region9: #{attention_forward.3} parent=1 // pred_fallthru
      _
    // Predicated region
    $region10: #{attention_forward.3} parent=1 // pred_check
      _
    $region11: #{attention_forward.3} parent=1 // pred_check_branch
      %34 = sbr.rel (0) target = $region13
    $region12: #{attention_forward.3} parent=1 // pred_region
      %35 = dma.done [#allocation4], 256
    $region13: #{attention_forward.3} parent=1 // pred_fallthru
      _
    // Predicated region
    $region14: #{attention_forward.3} parent=1 // pred_check
      _
    $region15: #{attention_forward.3} parent=1 // pred_check_branch
      %37 = sbr.rel (0) target = $region17
    $region16: #{attention_forward.3} parent=1 // pred_region
      %38 = dma.done [#allocation6], 512
    $region17: #{attention_forward.3} parent=1 // pred_fallthru
      _
    %p39 = scmp.eq.s32.totalorder 0, 0
    // Predicated region
    $region18: #{attention_forward.3} parent=1 // pred_check
      %p40 = pneg %p39
    $region19: #{attention_forward.3} parent=1 // pred_check_branch
      %42 = sbr.rel (%p40) target = $region21
    $region20: #{attention_forward.3} parent=1 // pred_region
      %vm43 = vcmask 523264
      %44 = vst.msk [vmem:[#allocation2] sm:$0xff] %vm43, 0.0
      %45 = vst.msk [vmem:[#allocation2 + $0x8] sm:$0xff] %vm43, 0.0
    $region21: #{attention_forward.3} parent=1 // pred_fallthru
      _
    %v46 = vld [vmem:[#allocation2] sm:$0xff]
    %v47 = vld [vmem:[#allocation2 + $0x8] sm:$0xff]
    %v48 = vld [vmem:[#allocation3] sm:$0xff]
    %v49 = vld [vmem:[#allocation3 + $0x8] sm:$0xff]
    %v50 = vld [vmem:[#allocation5] sm:$0xff]
    %v51 = vld [vmem:[#allocation5 + $0x8] sm:$0xff]
    %v52 = vld [vmem:[#allocation5 + $0x10] sm:$0xff]
    %v53 = vld [vmem:[#allocation5 + $0x18] sm:$0xff]
    %vm54 = vcmask 261120
    %v56 = vsel %vm54, %v48, 0
    %v59 = vsel %vm54, %v49, 0
    %61 = vmatprep.subr.mxu0 0.0
    %62 = vmatpush1.msra.mxu0 0.0
    %63 = vmatprep.subr.mxu0 0.0
    %64 = vmatpush1.msra.mxu0 0.0
    %65 = vmatprep.subr.mxu0 0.0
    %66 = vmatpush1.msra.mxu0 0.0
    %67 = vmatprep.subr.mxu0 0.0
    %68 = vmatpush1.msra.mxu0 0.0
    %69 = vmatprep.subr.mxu0 0.0
    %70 = vmatpush1.msra.mxu0 0.0
    %71 = vmatprep.subr.mxu0 0.0
    %72 = vmatpush1.msra.mxu0 0.0
    %73 = vmatprep.subr.mxu0 0.0
    %74 = vmatpush1.msra.mxu0 0.0
    %75 = vmatprep.subr.mxu0 0.0
    %76 = vmatpush1.msra.mxu0 0.0
    %77 = vmatprep.subr.mxu0 0.0
    %78 = vmatpush1.msra.mxu0 0.0
    %79 = vmatprep.subr.mxu0 0.0
    %80 = vmatpush1.msra.mxu0 0.0
    %81 = vmatprep.subr.mxu0 0.0
    %82 = vmatpush1.msra.mxu0 0.0
    %83 = vmatprep.subr.mxu0 0.0
    %84 = vmatpush1.msra.mxu0 0.0
    %85 = vmatprep.subr.mxu0 0.0
    %86 = vmatpush1.msra.mxu0 %v53
    %87 = vmatprep.subr.mxu0 0.0
    %88 = vmatpush1.msra.mxu0 %v52
    %89 = vmatprep.subr.mxu0 0.0
    %90 = vmatpush1.msra.mxu0 %v51
    %91 = vmatprep.subr.mxu0 0.0
    %92 = vmatpush1.msra.mxu0 %v50
    %93 = vmatprep.subr.mxu0 0.0
    %94 = vmatpush2.msra.mxu0 0.0
    %95 = vmatprep.subr.mxu0 0.0
    %96 = vmatpush2.msra.mxu0 0.0
    %97 = vmatprep.subr.mxu0 0.0
    %98 = vmatpush2.msra.mxu0 0.0
    %99 = vmatprep.subr.mxu0 0.0
    %100 = vmatpush2.msra.mxu0 0.0
    %101 = vmatprep.subr.mxu0 0.0
    %102 = vmatpush2.msra.mxu0 0.0
    %103 = vmatprep.subr.mxu0 0.0
    %104 = vmatpush2.msra.mxu0 0.0
    %105 = vmatprep.subr.mxu0 0.0
    %106 = vmatpush2.msra.mxu0 0.0
    %107 = vmatprep.subr.mxu0 0.0
    %108 = vmatpush2.msra.mxu0 0.0
    %109 = vmatprep.subr.mxu0 0.0
    %110 = vmatpush2.msra.mxu0 0.0
    %111 = vmatprep.subr.mxu0 0.0
    %112 = vmatpush2.msra.mxu0 0.0
    %113 = vmatprep.subr.mxu0 0.0
    %114 = vmatpush2.msra.mxu0 0.0
    %115 = vmatprep.subr.mxu0 0.0
    %116 = vmatpush2.msra.mxu0 0.0
    %117 = vmatprep.subr.mxu0 0.0
    %118 = vmatpush2.msra.mxu0 0.0
    %119 = vmatprep.subr.mxu0 0.0
    %120 = vmatpush2.msra.mxu0 0.0
    %121 = vmatprep.subr.mxu0 0.0
    %122 = vmatpush2.msra.mxu0 0.0
    %123 = vmatprep.subr.mxu0 0.0
    %124 = vmatpush2.msra.mxu0 0.0
    %125 = vmatprep.mubr.f32.mxu0 0.0
    %126 = vmatmul.mubr.f32.gmra.mxu0 %v56
    %v127 = vpop.f32.mrf.mxu0
    %v128 = vadd.f32 0.0, %v127
    %v129 = vpop.f32.mrf.mxu0
    %130 = vmatprep.mubr.f32.mxu0 0.0
    %131 = vmatmul.mubr.f32.gmra.mxu0 %v59
    %v132 = vpop.f32.mrf.mxu0
    %v133 = vadd.f32 0.0, %v132
    %v134 = vpop.f32.mrf.mxu0
    %135 = vdwg.mxu0
    %v136 = vadd.f32 %v46, %v128
    %v137 = vadd.f32 %v47, %v133
    %vm138 = vcmask 523264
    %139 = vst.msk [vmem:[#allocation2] sm:$0xff] %vm138, %v136
    %140 = vst.msk [vmem:[#allocation2 + $0x8] sm:$0xff] %vm138, %v137
    // Predicated region
    $region22: #{attention_forward.3} parent=1 // pred_check
      %p141 = pneg %p39
    $region23: #{attention_forward.3} parent=1 // pred_check_branch
      %143 = sbr.rel (%p141) target = $region25
    $region24: #{attention_forward.3} parent=1 // pred_region
      %v144 = vld [vmem:[#allocation2] sm:$0xff]
      %v145 = vld [vmem:[#allocation2 + $0x8] sm:$0xff]
      %146 = vst.msk [vmem:[%s2] sm:$0xff] %vm138, %v144
      %147 = vst.msk [vmem:[%s2 + $0x8] sm:$0xff] %vm138, %v145
    $region25: #{attention_forward.3} parent=1 // pred_fallthru
      _
    // Predicated region
    $region26: #{attention_forward.3} parent=1 // pred_check
      _
    $region27: #{attention_forward.3} parent=1 // pred_check_branch
      %149 = sbr.rel (0) target = $region29
    $region28: #{attention_forward.3} parent=1 // pred_region
      _
    $region29: #{attention_forward.3} parent=1 // pred_fallthru
      _
    // Predicated region
    $region30: #{attention_forward.3} parent=1 // pred_check
      _
    $region31: #{attention_forward.3} parent=1 // pred_check_branch
      %151 = sbr.rel (0) target = $region33
    $region32: #{attention_forward.3} parent=1 // pred_region
      _
    $region33: #{attention_forward.3} parent=1 // pred_fallthru
      _
    %152 = vsyncpa [#allocation4], 1
    %153 = vsyncpa [#allocation6], 1

// kernel: attention_forward.5
$region0: #{attention_forward.5}
  #allocation0 [shape = 'u32[]', space=smem, size = 0x4, offset = 0x4, fixed_abs, tag = 'smem constant byte address 0x4 - core index']
  #allocation1 [shape = 'u32[144,128]{1,0:T(1,128)}', space=vmem, size = 0x12000, scoped, tag = 'internal scratch']
  #allocation2 [shape = 'f32[16,32]{1,0:T(8,128)}', space=vmem, size = 0x2000, scoped, tag = 'scratch operand']
  %s0 = inlined_call_operand.vmem [shape: f32[16,32], index: 0, kind: input, shape index: {}]
  %s1 = inlined_call_operand.vmem [shape: f32[32,32], index: 1, kind: input, shape index: {}]
  %s2 = inlined_call_operand.hbm [shape: f32[16,32], index: 2, kind: output, shape index: {}]
  %s3 = sld [smem:[#allocation0]]
  $region26: #{attention_forward.5} parent=0
    _
  %s5 = ssub.s32 1, %s3
  %s6 = scalar_select 0, %s5, %s3
  $region1: #{attention_forward.5} parent=0
    #allocation3 [shape = 'u8[8192]{0}', space=vmem, size = 0x2000, scoped, tag = 'output window, operand 0, single buffered']
    #allocation4 [shape = 's32[1]{0}', space=sflag, size = 0x4, scoped, tag = 'scoped memory for attention_forward.5']
    %7 = vsyncpa [#allocation4], 0
    // Predicated region
    $region2: #{attention_forward.5} parent=1 // pred_check
      _
    $region3: #{attention_forward.5} parent=1 // pred_check_branch
      %9 = sbr.rel (0) target = $region5
    $region4: #{attention_forward.5} parent=1 // pred_region
      _
    $region5: #{attention_forward.5} parent=1 // pred_fallthru
      _
    // Predicated region
    $region6: #{attention_forward.5} parent=1 // pred_check
      _
    $region7: #{attention_forward.5} parent=1 // pred_check_branch
      %11 = sbr.rel (0) target = $region9
    $region8: #{attention_forward.5} parent=1 // pred_region
      _
    $region9: #{attention_forward.5} parent=1 // pred_fallthru
      _
    %p12 = scmp.eq.s32.totalorder 0, 0
    // Predicated region
    $region10: #{attention_forward.5} parent=1 // pred_check
      %p13 = pneg %p12
    $region11: #{attention_forward.5} parent=1 // pred_check_branch
      %15 = sbr.rel (%p13) target = $region13
    $region12: #{attention_forward.5} parent=1 // pred_region
      %vm16 = vcmask 261120
      %17 = vst.msk [vmem:[#allocation2] sm:$0xff] %vm16, 0.0
      %18 = vst.msk [vmem:[#allocation2 + $0x8] sm:$0xff] %vm16, 0.0
    $region13: #{attention_forward.5} parent=1 // pred_fallthru
      _
    %v19 = vld [vmem:[#allocation2] sm:$0xff]
    %v20 = vld [vmem:[#allocation2 + $0x8] sm:$0xff]
    %v21 = vld [vmem:[%s0] sm:$0xff]
    %v22 = vld [vmem:[%s0 + $0x8] sm:$0xff]
    %v23 = vld [vmem:[%s1] sm:$0xff]
    %v24 = vld [vmem:[%s1 + $0x8] sm:$0xff]
    %v25 = vld [vmem:[%s1 + $0x10] sm:$0xff]
    %v26 = vld [vmem:[%s1 + $0x18] sm:$0xff]
    %vm27 = vcmask 261120
    %v29 = vsel %vm27, %v21, 0
    %v32 = vsel %vm27, %v22, 0
    %34 = vmatprep.subr.mxu0 0.0
    %35 = vmatpush1.msra.mxu0 0.0
    %36 = vmatprep.subr.mxu0 0.0
    %37 = vmatpush1.msra.mxu0 0.0
    %38 = vmatprep.subr.mxu0 0.0
    %39 = vmatpush1.msra.mxu0 0.0
    %40 = vmatprep.subr.mxu0 0.0
    %41 = vmatpush1.msra.mxu0 0.0
    %42 = vmatprep.subr.mxu0 0.0
    %43 = vmatpush1.msra.mxu0 0.0
    %44 = vmatprep.subr.mxu0 0.0
    %45 = vmatpush1.msra.mxu0 0.0
    %46 = vmatprep.subr.mxu0 0.0
    %47 = vmatpush1.msra.mxu0 0.0
    %48 = vmatprep.subr.mxu0 0.0
    %49 = vmatpush1.msra.mxu0 0.0
    %50 = vmatprep.subr.mxu0 0.0
    %51 = vmatpush1.msra.mxu0 0.0
    %52 = vmatprep.subr.mxu0 0.0
    %53 = vmatpush1.msra.mxu0 0.0
    %54 = vmatprep.subr.mxu0 0.0
    %55 = vmatpush1.msra.mxu0 0.0
    %56 = vmatprep.subr.mxu0 0.0
    %57 = vmatpush1.msra.mxu0 0.0
    %58 = vmatprep.subr.mxu0 0.0
    %59 = vmatpush1.msra.mxu0 %v26
    %60 = vmatprep.subr.mxu0 0.0
    %61 = vmatpush1.msra.mxu0 %v25
    %62 = vmatprep.subr.mxu0 0.0
    %63 = vmatpush1.msra.mxu0 %v24
    %64 = vmatprep.subr.mxu0 0.0
    %65 = vmatpush1.msra.mxu0 %v23
    %66 = vmatprep.subr.mxu0 0.0
    %67 = vmatpush2.msra.mxu0 0.0
    %68 = vmatprep.subr.mxu0 0.0
    %69 = vmatpush2.msra.mxu0 0.0
    %70 = vmatprep.subr.mxu0 0.0
    %71 = vmatpush2.msra.mxu0 0.0
    %72 = vmatprep.subr.mxu0 0.0
    %73 = vmatpush2.msra.mxu0 0.0
    %74 = vmatprep.subr.mxu0 0.0
    %75 = vmatpush2.msra.mxu0 0.0
    %76 = vmatprep.subr.mxu0 0.0
    %77 = vmatpush2.msra.mxu0 0.0
    %78 = vmatprep.subr.mxu0 0.0
    %79 = vmatpush2.msra.mxu0 0.0
    %80 = vmatprep.subr.mxu0 0.0
    %81 = vmatpush2.msra.mxu0 0.0
    %82 = vmatprep.subr.mxu0 0.0
    %83 = vmatpush2.msra.mxu0 0.0
    %84 = vmatprep.subr.mxu0 0.0
    %85 = vmatpush2.msra.mxu0 0.0
    %86 = vmatprep.subr.mxu0 0.0
    %87 = vmatpush2.msra.mxu0 0.0
    %88 = vmatprep.subr.mxu0 0.0
    %89 = vmatpush2.msra.mxu0 0.0
    %90 = vmatprep.subr.mxu0 0.0
    %91 = vmatpush2.msra.mxu0 0.0
    %92 = vmatprep.subr.mxu0 0.0
    %93 = vmatpush2.msra.mxu0 0.0
    %94 = vmatprep.subr.mxu0 0.0
    %95 = vmatpush2.msra.mxu0 0.0
    %96 = vmatprep.subr.mxu0 0.0
    %97 = vmatpush2.msra.mxu0 0.0
    %98 = vmatprep.mubr.f32.mxu0 0.0
    %99 = vmatmul.mubr.f32.gmra.mxu0 %v29
    %v100 = vpop.f32.mrf.mxu0
    %v101 = vadd.f32 0.0, %v100
    %v102 = vpop.f32.mrf.mxu0
    %103 = vmatprep.mubr.f32.mxu0 0.0
    %104 = vmatmul.mubr.f32.gmra.mxu0 %v32
    %v105 = vpop.f32.mrf.mxu0
    %v106 = vadd.f32 0.0, %v105
    %v107 = vpop.f32.mrf.mxu0
    %108 = vdwg.mxu0
    %v109 = vadd.f32 %v19, %v101
    %v110 = vadd.f32 %v20, %v106
    %111 = vst.msk [vmem:[#allocation2] sm:$0xff] %vm27, %v109
    %112 = vst.msk [vmem:[#allocation2 + $0x8] sm:$0xff] %vm27, %v110
    // Predicated region
    $region14: #{attention_forward.5} parent=1 // pred_check
      %p113 = pneg %p12
    $region15: #{attention_forward.5} parent=1 // pred_check_branch
      %115 = sbr.rel (%p113) target = $region17
    $region16: #{attention_forward.5} parent=1 // pred_region
      %v116 = vld [vmem:[#allocation2] sm:$0xff]
      %v117 = vld [vmem:[#allocation2 + $0x8] sm:$0xff]
      %118 = vst.msk [vmem:[#allocation3] sm:$0xff] %vm27, %v116
      %119 = vst.msk [vmem:[#allocation3 + $0x8] sm:$0xff] %vm27, %v117
    $region17: #{attention_forward.5} parent=1 // pred_fallthru
      _
    // Predicated region
    $region18: #{attention_forward.5} parent=1 // pred_check
      _
    $region19: #{attention_forward.5} parent=1 // pred_check_branch
      %121 = sbr.rel (0) target = $region21
    $region20: #{attention_forward.5} parent=1 // pred_region
      %s123 = ssub.s32 256, 256
      %124 = vsyncadd [#allocation4], %s123
      %s125 = sshll.u32 [#allocation3], 4
      %s126 = int_to_ptr.vmem [resolvable:$true] %s125
      %131 = dma.vmem_to_hbm [thread:$0]  %s126, 256, %s2, [#allocation4], 128, 128, 8
    $region21: #{attention_forward.5} parent=1 // pred_fallthru
      _
    // Predicated region
    $region22: #{attention_forward.5} parent=1 // pred_check
      _
    $region23: #{attention_forward.5} parent=1 // pred_check_branch
      %133 = sbr.rel (0) target = $region25
    $region24: #{attention_forward.5} parent=1 // pred_region
      %134 = dma.done [#allocation4], 256
    $region25: #{attention_forward.5} parent=1 // pred_fallthru
      _
    %135 = vsyncpa [#allocation4], 1

// kernel: attention_forward.4
$region0: #{attention_forward.4}
  #allocation0 [shape = 'u32[]', space=smem, size = 0x4, offset = 0x4, fixed_abs, tag = 'smem constant byte address 0x4 - core index']
  #allocation1 [shape = 'u32[144,128]{1,0:T(1,128)}', space=vmem, size = 0x12000, scoped, tag = 'internal scratch']
  #allocation2 [shape = 'f32[2,8,1]{2,1,0:T(8,128)}', space=vmem, size = 0x2000, scoped, tag = 'scratch operand']
  #allocation3 [shape = 'f32[2,8,1]{2,1,0:T(8,128)}', space=vmem, size = 0x2000, scoped, tag = 'scratch operand']
  #allocation4 [shape = 'f32[2,8,8]{2,1,0:T(8,128)}', space=vmem, size = 0x2000, scoped, tag = 'scratch operand']
  %s0 = inlined_call_operand.vmem [shape: f32[4,2,8,8], index: 0, kind: input, shape index: {}]
  %s1 = inlined_call_operand.vmem [shape: f32[4,8,8], index: 1, kind: input, shape index: {}]
  %s2 = inlined_call_operand.vmem [shape: f32[4,8,8], index: 2, kind: input, shape index: {}]
  %s3 = inlined_call_operand.vmem [shape: f32[4,2,8,8], index: 3, kind: output, shape index: {}]
  %s4 = sld [smem:[#allocation0]]
  $region57: #{attention_forward.4} parent=0
    _
  %s6 = ssub.s32 1, %s4
  %s7 = scalar_select 0, %s6, %s4
  loop: start=0, step=1, limit=6
  $region2: #{attention_forward.4} parent=0 // loop_pre_header
    _
  $region3: #{attention_forward.4} parent=0 // loop_header
    %s9 = sphi 0, %s13
    %p10 = scmp.ge.s32.totalorder %s9, 6
    %s16 = sphi 0, %s35
    %s17 = sphi 0, %s31
    %s18 = sphi 0, %s27
    %s19 = sphi 0, %s16
    %s20 = sphi 0, %s17
    %s21 = sphi 0, %s18
    %s22 = sphi 0, %s19
    %s23 = sphi 0, %s20
    %s24 = sphi 0, %s21
    %s40 = sphi 0, %s42
    %s43 = sphi 0, %s40
    %s44 = sphi 0, %s43
    %s60 = sphi 0, %s44
    %s68 = sphi 0, %s70
    %s71 = sphi 0, %s68
    %s72 = sphi 0, %s71
    %s88 = sphi 0, %s72
    %s96 = sphi 0, %s98
    %s99 = sphi 0, %s96
    %s100 = sphi 0, %s99
    %s116 = sphi 0, %s100
    %s124 = sphi 0, %s126
    %s127 = sphi 0, %s124
    %s128 = sphi 0, %s127
    %s144 = sphi 0, %s128
  $region4: #{attention_forward.4} parent=0 // loop_header_branch
    %12 = sbr.rel (%p10) target = $region8
  $region5: #{attention_forward.4} parent=0 // loop_body
    %s14 = ssub.s32 %s9, 1
    %s15 = ssub.s32 %s9, 2
    %s25 = sadd.s32 1, %s18
    %p26 = scmp.ge.s32.totalorder %s25, 1
    %s27 = scalar_select %p26, 0, %s25
    %s28 = sadd.s32 1, %s17
    %s29 = scalar_select %p26, %s28, %s17
    %p30 = scmp.ge.s32.totalorder %s29, 1
    %s31 = scalar_select %p30, 0, %s29
    %s32 = sadd.s32 1, %s16
    %s33 = scalar_select %p30, %s32, %s16
    %p34 = scmp.ge.s32.totalorder %s33, 4
    %s35 = scalar_select %p34, 0, %s33
    %s36 = ssub.s32 %s16, %s35
    %s37 = ssub.s32 %s17, %s31
    %s38 = sor.u32 %s36, %s37
    %p39 = scmp.eq.s32.totalorder %s38, 0
    %s41 = sadd.s32 %s40, 1
    %s42 = scalar_select %p39, %s40, %s41
    %p45 = pneg %p39
    %p46 = scmp.eq.s32.totalorder %s9, 3
    %p47 = por %p45, %p46
    %p48 = scmp.ne.s32.totalorder %s40, %s43
    %p49 = scmp.eq.s32.totalorder %s9, 0
    %p50 = por %p48, %p49
    %p51 = scmp.ne.s32.totalorder %s40, %s43
    %p52 = scmp.eq.s32.totalorder %s14, 3
    %p53 = por %p51, %p52
    %p54 = scmp.ne.s32.totalorder %s43, %s44
    %p55 = scmp.eq.s32.totalorder %s14, 0
    %p56 = por %p54, %p55
    %p57 = scmp.ne.s32.totalorder %s43, %s44
    %p58 = scmp.eq.s32.totalorder %s15, 3
    %p59 = por %p57, %p58
    %p61 = scmp.ne.s32.totalorder %s44, %s60
    %p62 = scmp.eq.s32.totalorder %s15, 0
    %p63 = por %p61, %p62
    %s64 = ssub.s32 %s16, %s35
    %s65 = ssub.s32 %s18, %s27
    %s66 = sor.u32 %s64, %s65
    %p67 = scmp.eq.s32.totalorder %s66, 0
    %s69 = sadd.s32 %s68, 1
    %s70 = scalar_select %p67, %s68, %s69
    %p73 = pneg %p67
    %p74 = scmp.eq.s32.totalorder %s9, 3
    %p75 = por %p73, %p74
    %p76 = scmp.ne.s32.totalorder %s68, %s71
    %p77 = scmp.eq.s32.totalorder %s9, 0
    %p78 = por %p76, %p77
    %p79 = scmp.ne.s32.totalorder %s68, %s71
    %p80 = scmp.eq.s32.totalorder %s14, 3
    %p81 = por %p79, %p80
    %p82 = scmp.ne.s32.totalorder %s71, %s72
    %p83 = scmp.eq.s32.totalorder %s14, 0
    %p84 = por %p82, %p83
    %p85 = scmp.ne.s32.totalorder %s71, %s72
    %p86 = scmp.eq.s32.totalorder %s15, 3
    %p87 = por %p85, %p86
    %p89 = scmp.ne.s32.totalorder %s72, %s88
    %p90 = scmp.eq.s32.totalorder %s15, 0
    %p91 = por %p89, %p90
    %s92 = ssub.s32 %s16, %s35
    %s93 = ssub.s32 %s18, %s27
    %s94 = sor.u32 %s92, %s93
    %p95 = scmp.eq.s32.totalorder %s94, 0
    %s97 = sadd.s32 %s96, 1
    %s98 = scalar_select %p95, %s96, %s97
    %p101 = pneg %p95
    %p102 = scmp.eq.s32.totalorder %s9, 3
    %p103 = por %p101, %p102
    %p104 = scmp.ne.s32.totalorder %s96, %s99
    %p105 = scmp.eq.s32.totalorder %s9, 0
    %p106 = por %p104, %p105
    %p107 = scmp.ne.s32.totalorder %s96, %s99
    %p108 = scmp.eq.s32.totalorder %s14, 3
    %p109 = por %p107, %p108
    %p110 = scmp.ne.s32.totalorder %s99, %s100
    %p111 = scmp.eq.s32.totalorder %s14, 0
    %p112 = por %p110, %p111
    %p113 = scmp.ne.s32.totalorder %s99, %s100
    %p114 = scmp.eq.s32.totalorder %s15, 3
    %p115 = por %p113, %p114
    %p117 = scmp.ne.s32.totalorder %s100, %s116
    %p118 = scmp.eq.s32.totalorder %s15, 0
    %p119 = por %p117, %p118
    %s120 = ssub.s32 %s16, %s35
    %s121 = ssub.s32 %s17, %s31
    %s122 = sor.u32 %s120, %s121
    %p123 = scmp.eq.s32.totalorder %s122, 0
    %s125 = sadd.s32 %s124, 1
    %s126 = scalar_select %p123, %s124, %s125
    %p129 = pneg %p123
    %p130 = scmp.eq.s32.totalorder %s9, 3
    %p131 = por %p129, %p130
    %p132 = scmp.ne.s32.totalorder %s124, %s127
    %p133 = scmp.eq.s32.totalorder %s9, 0
    %p134 = por %p132, %p133
    %p135 = scmp.ne.s32.totalorder %s124, %s127
    %p136 = scmp.eq.s32.totalorder %s14, 3
    %p137 = por %p135, %p136
    %p138 = scmp.ne.s32.totalorder %s127, %s128
    %p139 = scmp.eq.s32.totalorder %s14, 0
    %p140 = por %p138, %p139
    %p141 = scmp.ne.s32.totalorder %s127, %s128
    %p142 = scmp.eq.s32.totalorder %s15, 3
    %p143 = por %p141, %p142
    %p145 = scmp.ne.s32.totalorder %s128, %s144
    %p146 = scmp.eq.s32.totalorder %s15, 0
    %p147 = por %p145, %p146
    %p148 = scmp.le.s32.totalorder 1, %s9
    %p149 = scmp.lt.s32.totalorder %s9, 5
    %p150 = pnand %p148, %p149
    %p151 = pneg %p150
    // Predicated region
    $region9: #{attention_forward.4} parent=5 // pred_check
      _
    $region10: #{attention_forward.4} parent=5 // pred_check_branch
      %153 = sbr.rel (%p150) target = $region12
    $region11: #{attention_forward.4} parent=5 // pred_region
      %s154 = ssub.s32 %s9, 1
    $region12: #{attention_forward.4} parent=5 // pred_fallthru
      _
    %p155 = scmp.lt.s32.totalorder %s9, 4
    // Predicated region
    $region13: #{attention_forward.4} parent=5 // pred_check
      %p156 = pneg %p155
    $region14: #{attention_forward.4} parent=5 // pred_check_branch
      %158 = sbr.rel (%p156) target = $region16
    $region15: #{attention_forward.4} parent=5 // pred_region
      // Predicated region
      $region17: #{attention_forward.4} parent=15 // pred_check
        %p159 = pneg %p50
      $region18: #{attention_forward.4} parent=15 // pred_check_branch
        %161 = sbr.rel (%p159) target = $region20
      $region19: #{attention_forward.4} parent=15 // pred_region
        %p162 = scmp.lt.s32.totalorder %s16, 3
        %s163 = scalar_select %p162, %s16, 3
        %p164 = scmp.lt.s32.totalorder %s17, 0
        %s165 = scalar_select %p164, %s17, 0
        %s166 = smul.addr %s163, 2
        %s167 = sadd.s32 %s165, %s166
        %s168 = smul.addr %s167, 8
        %s169 = scalar_lea.vmem %s0, %s168
      $region20: #{attention_forward.4} parent=15 // pred_fallthru
        _
      // Predicated region
      $region21: #{attention_forward.4} parent=15 // pred_check
        %p170 = pneg %p78
      $region22: #{attention_forward.4} parent=15 // pred_check_branch
        %172 = sbr.rel (%p170) target = $region24
      $region23: #{attention_forward.4} parent=15 // pred_region
        %p173 = scmp.lt.s32.totalorder %s16, 3
        %s174 = scalar_select %p173, %s16, 3
        %p175 = scmp.lt.s32.totalorder %s18, 0
        %s176 = scalar_select %p175, %s18, 0
        %s177 = sadd.s32 %s176, %s174
        %s178 = smul.addr %s177, 8
        %s179 = scalar_lea.vmem %s1, %s178
      $region24: #{attention_forward.4} parent=15 // pred_fallthru
        _
      // Predicated region
      $region25: #{attention_forward.4} parent=15 // pred_check
        %p180 = pneg %p106
      $region26: #{attention_forward.4} parent=15 // pred_check_branch
        %182 = sbr.rel (%p180) target = $region28
      $region27: #{attention_forward.4} parent=15 // pred_region
        %p183 = scmp.lt.s32.totalorder %s16, 3
        %s184 = scalar_select %p183, %s16, 3
        %p185 = scmp.lt.s32.totalorder %s18, 0
        %s186 = scalar_select %p185, %s18, 0
        %s187 = sadd.s32 %s186, %s184
        %s188 = smul.addr %s187, 8
        %s189 = scalar_lea.vmem %s2, %s188
      $region28: #{attention_forward.4} parent=15 // pred_fallthru
        _
    $region16: #{attention_forward.4} parent=5 // pred_fallthru
      _
    %p190 = scmp.le.s32.totalorder 1, %s9
    %p191 = scmp.lt.s32.totalorder %s9, 5
    %p192 = pnand %p190, %p191
    %p193 = pneg %p192
    // Predicated region
    $region29: #{attention_forward.4} parent=5 // pred_check
      _
    $region30: #{attention_forward.4} parent=5 // pred_check_branch
      %195 = sbr.rel (%p192) target = $region32
    $region31: #{attention_forward.4} parent=5 // pred_region
      %s196 = ssub.s32 %s9, 1
      %p197 = scmp.lt.s32.totalorder %s19, 3
      %s198 = scalar_select %p197, %s19, 3
      %p199 = scmp.lt.s32.totalorder %s20, 0
      %s200 = scalar_select %p199, %s20, 0
      %s201 = smul.addr %s198, 2
      %s202 = sadd.s32 %s200, %s201
      %s203 = smul.addr %s202, 8
      %s204 = scalar_lea.vmem %s0, %s203
      %p205 = pneg %p56
      %p206 = pneg %p53
      %p207 = scmp.lt.s32.totalorder %s19, 3
      %s208 = scalar_select %p207, %s19, 3
      %p209 = scmp.lt.s32.totalorder %s21, 0
      %s210 = scalar_select %p209, %s21, 0
      %s211 = sadd.s32 %s210, %s208
      %s212 = smul.addr %s211, 8
      %s213 = scalar_lea.vmem %s1, %s212
      %p214 = pneg %p84
      %p215 = pneg %p81
      %p216 = scmp.lt.s32.totalorder %s19, 3
      %s217 = scalar_select %p216, %s19, 3
      %p218 = scmp.lt.s32.totalorder %s21, 0
      %s219 = scalar_select %p218, %s21, 0
      %s220 = sadd.s32 %s219, %s217
      %s221 = smul.addr %s220, 8
      %s222 = scalar_lea.vmem %s2, %s221
      %p223 = pneg %p112
      %p224 = pneg %p109
      %p225 = pneg %p140
      %p226 = pneg %p137
      %p227 = scmp.lt.s32.totalorder %s19, 3
      %s228 = scalar_select %p227, %s19, 3
      %p229 = scmp.lt.s32.totalorder %s20, 0
      %s230 = scalar_select %p229, %s20, 0
      %s231 = smul.addr %s228, 2
      %s232 = sadd.s32 %s230, %s231
      %s233 = smul.addr %s232, 8
      %s234 = scalar_lea.vmem %s3, %s233
      %p235 = scmp.lt.s32.totalorder %s19, 3
      %s236 = scalar_select %p235, %s19, 3
      %p237 = scmp.lt.s32.totalorder %s20, 0
      %s238 = scalar_select %p237, %s20, 0
      %s239 = smul.addr %s236, 2
      %s240 = sadd.s32 %s238, %s239
      %s241 = smul.addr %s240, 8
      %s242 = scalar_lea.vmem %s0, %s241
      %p243 = scmp.lt.s32.totalorder %s19, 3
      %s244 = scalar_select %p243, %s19, 3
      %p245 = scmp.lt.s32.totalorder %s21, 0
      %s246 = scalar_select %p245, %s21, 0
      %s247 = sadd.s32 %s246, %s244
      %s248 = smul.addr %s247, 8
      %s249 = scalar_lea.vmem %s1, %s248
      %p250 = scmp.lt.s32.totalorder %s19, 3
      %s251 = scalar_select %p250, %s19, 3
      %p252 = scmp.lt.s32.totalorder %s21, 0
      %s253 = scalar_select %p252, %s21, 0
      %s254 = sadd.s32 %s253, %s251
      %s255 = smul.addr %s254, 8
      %s256 = scalar_lea.vmem %s2, %s255
      %p257 = scmp.lt.s32.totalorder %s19, 3
      %s258 = scalar_select %p257, %s19, 3
      %p259 = scmp.lt.s32.totalorder %s20, 0
      %s260 = scalar_select %p259, %s20, 0
      %s261 = smul.addr %s258, 2
      %s262 = sadd.s32 %s260, %s261
      %s263 = smul.addr %s262, 8
      %s264 = scalar_lea.vmem %s3, %s263
      %p265 = scmp.eq.s32.totalorder %s21, 0
      // Predicated region
      $region33: #{attention_forward.4} parent=31 // pred_check
        %p266 = pneg %p265
      $region34: #{attention_forward.4} parent=31 // pred_check_branch
        %268 = sbr.rel (%p266) target = $region36
      $region35: #{attention_forward.4} parent=31 // pred_region
        %vm269 = vcmask 7168
        %270 = vst.msk [vmem:[#allocation2] sm:$0xff] %vm269, -inf
        %271 = vst.msk [vmem:[#allocation2 + $0x8] sm:$0xff] %vm269, -inf
        %272 = vst.msk [vmem:[#allocation3] sm:$0xff] %vm269, 0.0
        %273 = vst.msk [vmem:[#allocation3 + $0x8] sm:$0xff] %vm269, 0.0
        %vm274 = vcmask 64512
        %275 = vst.msk [vmem:[#allocation4] sm:$0xff] %vm274, 0.0
        %276 = vst.msk [vmem:[#allocation4 + $0x8] sm:$0xff] %vm274, 0.0
      $region36: #{attention_forward.4} parent=31 // pred_fallthru
        _
      %s277 = smul.u32 %s21, 8
      %s278 = smul.u32 %s20, 8
      %s279 = sadd.s32 %s278, 7
      %p280 = scmp.le.s32.totalorder %s277, %s279
      // Predicated region
      $region37: #{attention_forward.4} parent=31 // pred_check
        %p281 = pneg %p280
      $region38: #{attention_forward.4} parent=31 // pred_check_branch
        %283 = sbr.rel (%p281) target = $region40
      $region39: #{attention_forward.4} parent=31 // pred_region
        %v284 = vld [vmem:[%s249] sm:$0xff]
        %v285 = vld [vmem:[%s256] sm:$0xff]
        %v286 = vld [vmem:[%s242] sm:$0xff]
        %v287 = vld [vmem:[%s242 + $0x8] sm:$0xff]
        %v288 = vmul.f32 %v286, 0.35355338
        %v289 = vmul.f32 %v287, 0.35355338
        %v290 = vlaneseq
        %v291 = vshrl.u32 %v290, 7
        %v292 = vstv %s278
        %v293 = vadd.s32 %v292, %v291
        %v294 = vlaneseq
        %v295 = vand.u32 %v294, 127
        %v296 = vstv %s277
        %v297 = vadd.s32 %v296, %v295
        %vm298 = vcmp.le.s32.totalorder %v297, %v293
        %vm299 = vcmask 64512
        %v301 = vsel %vm299, %v288, 0
        %v304 = vsel %vm299, %v284, 0
        %306 = vmatprep.subr.mxu0 0.0
        %307 = vmatpush1.xpose.msra.mxu0 0.0
        %308 = vmatprep.subr.mxu0 0.0
        %309 = vmatpush1.xpose.msra.mxu0 0.0
        %310 = vmatprep.subr.mxu0 0.0
        %311 = vmatpush1.xpose.msra.mxu0 0.0
        %312 = vmatprep.subr.mxu0 0.0
        %313 = vmatpush1.xpose.msra.mxu0 0.0
        %314 = vmatprep.subr.mxu0 0.0
        %315 = vmatpush1.xpose.msra.mxu0 0.0
        %316 = vmatprep.subr.mxu0 0.0
        %317 = vmatpush1.xpose.msra.mxu0 0.0
        %318 = vmatprep.subr.mxu0 0.0
        %319 = vmatpush1.xpose.msra.mxu0 0.0
        %320 = vmatprep.subr.mxu0 0.0
        %321 = vmatpush1.xpose.msra.mxu0 0.0
        %322 = vmatprep.subr.mxu0 0.0
        %323 = vmatpush1.xpose.msra.mxu0 0.0
        %324 = vmatprep.subr.mxu0 0.0
        %325 = vmatpush1.xpose.msra.mxu0 0.0
        %326 = vmatprep.subr.mxu0 0.0
        %327 = vmatpush1.xpose.msra.mxu0 0.0
        %328 = vmatprep.subr.mxu0 0.0
        %329 = vmatpush1.xpose.msra.mxu0 0.0
        %330 = vmatprep.subr.mxu0 0.0
        %331 = vmatpush1.xpose.msra.mxu0 0.0
        %332 = vmatprep.subr.mxu0 0.0
        %333 = vmatpush1.xpose.msra.mxu0 0.0
        %334 = vmatprep.subr.mxu0 0.0
        %335 = vmatpush1.xpose.msra.mxu0 0.0
        %336 = vmatprep.subr.mxu0 0.0
        %337 = vmatpush1.xpose.msra.mxu0 %v304
        %338 = vmatprep.subr.mxu0 0.0
        %339 = vmatpush2.xpose.msra.mxu0 0.0
        %340 = vmatprep.subr.mxu0 0.0
        %341 = vmatpush2.xpose.msra.mxu0 0.0
        %342 = vmatprep.subr.mxu0 0.0
        %343 = vmatpush2.xpose.msra.mxu0 0.0
        %344 = vmatprep.subr.mxu0 0.0
        %345 = vmatpush2.xpose.msra.mxu0 0.0
        %346 = vmatprep.subr.mxu0 0.0
        %347 = vmatpush2.xpose.msra.mxu0 0.0
        %348 = vmatprep.subr.mxu0 0.0
        %349 = vmatpush2.xpose.msra.mxu0 0.0
        %350 = vmatprep.subr.mxu0 0.0
        %351 = vmatpush2.xpose.msra.mxu0 0.0
        %352 = vmatprep.subr.mxu0 0.0
        %353 = vmatpush2.xpose.msra.mxu0 0.0
        %354 = vmatprep.subr.mxu0 0.0
        %355 = vmatpush2.xpose.msra.mxu0 0.0
        %356 = vmatprep.subr.mxu0 0.0
        %357 = vmatpush2.xpose.msra.mxu0 0.0
        %358 = vmatprep.subr.mxu0 0.0
        %359 = vmatpush2.xpose.msra.mxu0 0.0
        %360 = vmatprep.subr.mxu0 0.0
        %361 = vmatpush2.xpose.msra.mxu0 0.0
        %362 = vmatprep.subr.mxu0 0.0
        %363 = vmatpush2.xpose.msra.mxu0 0.0
        %364 = vmatprep.subr.mxu0 0.0
        %365 = vmatpush2.xpose.msra.mxu0 0.0
        %366 = vmatprep.subr.mxu0 0.0
        %367 = vmatpush2.xpose.msra.mxu0 0.0
        %368 = vmatprep.subr.mxu0 0.0
        %369 = vmatpush2.xpose.msra.mxu0 0.0
        %370 = vmatprep.mubr.f32.mxu0 0.0
        %371 = vmatmul.mubr.f32.gmra.mxu0 %v301
        %v372 = vpop.f32.mrf.mxu0
        %v373 = vadd.f32 0.0, %v372
        %v374 = vpop.f32.mrf.mxu0
        %375 = vdwg.mxu0
        %v376 = vsel %vm298, %v373, -inf
        %v377 = vld [vmem:[#allocation2] sm:$0xff]
        %v378 = vsel %vm299, %v376, -inf
        %379 = vmax.xlane.f32.xlu0 %v378
        %v380 = vpop.xlane.xlu0 %379
        %v381 = vmax.f32 %v377, %v380
        %v382 = vsub.f32 %v377, %v381
        %v383 = vmul.f32 %v382, 1.442695
        %v384 = vpow.pop %v383
        %386 = vset.pattern.permute.xlu0 0
        %387 = vperm.xlu0 %386, %v381
        %v388 = vpop.permute.xlu0 %387
        %v390 = vsub.f32 %v376, %v388
        %v391 = vmul.f32 %v390, 1.442695
        %v392 = vpow.pop %v391
        %v393 = vld [vmem:[#allocation3] sm:$0xff]
        %v394 = vmul.f32 %v384, %v393
        %v395 = vsel %vm299, %v392, 0.0
        %396 = vadd.xlane.f32.xlu0 %v395
        %v397 = vpop.xlane.xlu0 %396
        %v398 = vadd.f32 %v394, %v397
        %vm399 = vcmask 7168
        %400 = vst.msk [vmem:[#allocation3] sm:$0xff] %vm399, %v398
        %v401 = vld [vmem:[#allocation4] sm:$0xff]
        %403 = vset.pattern.permute.xlu0 0
        %404 = vperm.xlu0 %403, %v384
        %v405 = vpop.permute.xlu0 %404
        %v407 = vmul.f32 %v405, %v401
        %v409 = vsel %vm299, %v392, 0
        %411 = vmatprep.subr.mxu0 0.0
        %412 = vmatpush1.msra.mxu0 0.0
        %413 = vmatprep.subr.mxu0 0.0
        %414 = vmatpush1.msra.mxu0 0.0
        %415 = vmatprep.subr.mxu0 0.0
        %416 = vmatpush1.msra.mxu0 0.0
        %417 = vmatprep.subr.mxu0 0.0
        %418 = vmatpush1.msra.mxu0 0.0
        %419 = vmatprep.subr.mxu0 0.0
        %420 = vmatpush1.msra.mxu0 0.0
        %421 = vmatprep.subr.mxu0 0.0
        %422 = vmatpush1.msra.mxu0 0.0
        %423 = vmatprep.subr.mxu0 0.0
        %424 = vmatpush1.msra.mxu0 0.0
        %425 = vmatprep.subr.mxu0 0.0
        %426 = vmatpush1.msra.mxu0 0.0
        %427 = vmatprep.subr.mxu0 0.0
        %428 = vmatpush1.msra.mxu0 0.0
        %429 = vmatprep.subr.mxu0 0.0
        %430 = vmatpush1.msra.mxu0 0.0
        %431 = vmatprep.subr.mxu0 0.0
        %432 = vmatpush1.msra.mxu0 0.0
        %433 = vmatprep.subr.mxu0 0.0
        %434 = vmatpush1.msra.mxu0 0.0
        %435 = vmatprep.subr.mxu0 0.0
        %436 = vmatpush1.msra.mxu0 0.0
        %437 = vmatprep.subr.mxu0 0.0
        %438 = vmatpush1.msra.mxu0 0.0
        %439 = vmatprep.subr.mxu0 0.0
        %440 = vmatpush1.msra.mxu0 0.0
        %441 = vmatprep.subr.mxu0 0.0
        %442 = vmatpush1.msra.mxu0 %v285
        %443 = vmatprep.subr.mxu0 0.0
        %444 = vmatpush2.msra.mxu0 0.0
        %445 = vmatprep.subr.mxu0 0.0
        %446 = vmatpush2.msra.mxu0 0.0
        %447 = vmatprep.subr.mxu0 0.0
        %448 = vmatpush2.msra.mxu0 0.0
        %449 = vmatprep.subr.mxu0 0.0
        %450 = vmatpush2.msra.mxu0 0.0
        %451 = vmatprep.subr.mxu0 0.0
        %452 = vmatpush2.msra.mxu0 0.0
        %453 = vmatprep.subr.mxu0 0.0
        %454 = vmatpush2.msra.mxu0 0.0
        %455 = vmatprep.subr.mxu0 0.0
        %456 = vmatpush2.msra.mxu0 0.0
        %457 = vmatprep.subr.mxu0 0.0
        %458 = vmatpush2.msra.mxu0 0.0
        %459 = vmatprep.subr.mxu0 0.0
        %460 = vmatpush2.msra.mxu0 0.0
        %461 = vmatprep.subr.mxu0 0.0
        %462 = vmatpush2.msra.mxu0 0.0
        %463 = vmatprep.subr.mxu0 0.0
        %464 = vmatpush2.msra.mxu0 0.0
        %465 = vmatprep.subr.mxu0 0.0
        %466 = vmatpush2.msra.mxu0 0.0
        %467 = vmatprep.subr.mxu0 0.0
        %468 = vmatpush2.msra.mxu0 0.0
        %469 = vmatprep.subr.mxu0 0.0
        %470 = vmatpush2.msra.mxu0 0.0
        %471 = vmatprep.subr.mxu0 0.0
        %472 = vmatpush2.msra.mxu0 0.0
        %473 = vmatprep.subr.mxu0 0.0
        %474 = vmatpush2.msra.mxu0 0.0
        %475 = vmatprep.mubr.f32.mxu0 0.0
        %476 = vmatmul.mubr.f32.gmra.mxu0 %v409
        %v477 = vpop.f32.mrf.mxu0
        %v478 = vadd.f32 0.0, %v477
        %v479 = vpop.f32.mrf.mxu0
        %480 = vdwg.mxu0
        %v481 = vadd.f32 %v407, %v478
        %482 = vst.msk [vmem:[#allocation4] sm:$0xff] %vm299, %v481
        %483 = vst.msk [vmem:[#allocation2] sm:$0xff] %vm399, %v381
        %v485 = vsel %vm299, %v289, 0
        %487 = vmatprep.subr.mxu0 0.0
        %488 = vmatpush1.xpose.msra.mxu0 0.0
        %489 = vmatprep.subr.mxu0 0.0
        %490 = vmatpush1.xpose.msra.mxu0 0.0
        %491 = vmatprep.subr.mxu0 0.0
        %492 = vmatpush1.xpose.msra.mxu0 0.0
        %493 = vmatprep.subr.mxu0 0.0
        %494 = vmatpush1.xpose.msra.mxu0 0.0
        %495 = vmatprep.subr.mxu0 0.0
        %496 = vmatpush1.xpose.msra.mxu0 0.0
        %497 = vmatprep.subr.mxu0 0.0
        %498 = vmatpush1.xpose.msra.mxu0 0.0
        %499 = vmatprep.subr.mxu0 0.0
        %500 = vmatpush1.xpose.msra.mxu0 0.0
        %501 = vmatprep.subr.mxu0 0.0
        %502 = vmatpush1.xpose.msra.mxu0 0.0
        %503 = vmatprep.subr.mxu0 0.0
        %504 = vmatpush1.xpose.msra.mxu0 0.0
        %505 = vmatprep.subr.mxu0 0.0
        %506 = vmatpush1.xpose.msra.mxu0 0.0
        %507 = vmatprep.subr.mxu0 0.0
        %508 = vmatpush1.xpose.msra.mxu0 0.0
        %509 = vmatprep.subr.mxu0 0.0
        %510 = vmatpush1.xpose.msra.mxu0 0.0
        %511 = vmatprep.subr.mxu0 0.0
        %512 = vmatpush1.xpose.msra.mxu0 0.0
        %513 = vmatprep.subr.mxu0 0.0
        %514 = vmatpush1.xpose.msra.mxu0 0.0
        %515 = vmatprep.subr.mxu0 0.0
        %516 = vmatpush1.xpose.msra.mxu0 0.0
        %517 = vmatprep.subr.mxu0 0.0
        %518 = vmatpush1.xpose.msra.mxu0 %v304
        %519 = vmatprep.subr.mxu0 0.0
        %520 = vmatpush2.xpose.msra.mxu0 0.0
        %521 = vmatprep.subr.mxu0 0.0
        %522 = vmatpush2.xpose.msra.mxu0 0.0
        %523 = vmatprep.subr.mxu0 0.0
        %524 = vmatpush2.xpose.msra.mxu0 0.0
        %525 = vmatprep.subr.mxu0 0.0
        %526 = vmatpush2.xpose.msra.mxu0 0.0
        %527 = vmatprep.subr.mxu0 0.0
        %528 = vmatpush2.xpose.msra.mxu0 0.0
        %529 = vmatprep.subr.mxu0 0.0
        %530 = vmatpush2.xpose.msra.mxu0 0.0
        %531 = vmatprep.subr.mxu0 0.0
        %532 = vmatpush2.xpose.msra.mxu0 0.0
        %533 = vmatprep.subr.mxu0 0.0
        %534 = vmatpush2.xpose.msra.mxu0 0.0
        %535 = vmatprep.subr.mxu0 0.0
        %536 = vmatpush2.xpose.msra.mxu0 0.0
        %537 = vmatprep.subr.mxu0 0.0
        %538 = vmatpush2.xpose.msra.mxu0 0.0
        %539 = vmatprep.subr.mxu0 0.0
        %540 = vmatpush2.xpose.msra.mxu0 0.0
        %541 = vmatprep.subr.mxu0 0.0
        %542 = vmatpush2.xpose.msra.mxu0 0.0
        %543 = vmatprep.subr.mxu0 0.0
        %544 = vmatpush2.xpose.msra.mxu0 0.0
        %545 = vmatprep.subr.mxu0 0.0
        %546 = vmatpush2.xpose.msra.mxu0 0.0
        %547 = vmatprep.subr.mxu0 0.0
        %548 = vmatpush2.xpose.msra.mxu0 0.0
        %549 = vmatprep.subr.mxu0 0.0
        %550 = vmatpush2.xpose.msra.mxu0 0.0
        %551 = vmatprep.mubr.f32.mxu0 0.0
        %552 = vmatmul.mubr.f32.gmra.mxu0 %v485
        %v553 = vpop.f32.mrf.mxu0
        %v554 = vadd.f32 0.0, %v553
        %v555 = vpop.f32.mrf.mxu0
        %556 = vdwg.mxu0
        %v557 = vsel %vm298, %v554, -inf
        %s558 = scalar_lea.vmem [#allocation2], 8
        %v559 = vld [vmem:[%s558] sm:$0xff]
        %v560 = vsel %vm299, %v557, -inf
        %561 = vmax.xlane.f32.xlu0 %v560
        %v562 = vpop.xlane.xlu0 %561
        %v563 = vmax.f32 %v559, %v562
        %v564 = vsub.f32 %v559, %v563
        %v565 = vmul.f32 %v564, 1.442695
        %v566 = vpow.pop %v565
        %568 = vset.pattern.permute.xlu0 0
        %569 = vperm.xlu0 %568, %v563
        %v570 = vpop.permute.xlu0 %569
        %v572 = vsub.f32 %v557, %v570
        %v573 = vmul.f32 %v572, 1.442695
        %v574 = vpow.pop %v573
        %s575 = scalar_lea.vmem [#allocation3], 8
        %v576 = vld [vmem:[%s575] sm:$0xff]
        %v577 = vmul.f32 %v566, %v576
        %v578 = vsel %vm299, %v574, 0.0
        %579 = vadd.xlane.f32.xlu0 %v578
        %v580 = vpop.xlane.xlu0 %579
        %v581 = vadd.f32 %v577, %v580
        %582 = vst.msk [vmem:[%s575] sm:$0xff] %vm399, %v581
        %s583 = scalar_lea.vmem [#allocation4], 8
        %v584 = vld [vmem:[%s583] sm:$0xff]
        %586 = vset.pattern.permute.xlu0 0
        %587 = vperm.xlu0 %586, %v566
        %v588 = vpop.permute.xlu0 %587
        %v590 = vmul.f32 %v588, %v584
        %v592 = vsel %vm299, %v574, 0
        %594 = vmatprep.subr.mxu0 0.0
        %595 = vmatpush1.msra.mxu0 0.0
        %596 = vmatprep.subr.mxu0 0.0
        %597 = vmatpush1.msra.mxu0 0.0
        %598 = vmatprep.subr.mxu0 0.0
        %599 = vmatpush1.msra.mxu0 0.0
        %600 = vmatprep.subr.mxu0 0.0
        %601 = vmatpush1.msra.mxu0 0.0
        %602 = vmatprep.subr.mxu0 0.0
        %603 = vmatpush1.msra.mxu0 0.0
        %604 = vmatprep.subr.mxu0 0.0
        %605 = vmatpush1.msra.mxu0 0.0
        %606 = vmatprep.subr.mxu0 0.0
        %607 = vmatpush1.msra.mxu0 0.0
        %608 = vmatprep.subr.mxu0 0.0
        %609 = vmatpush1.msra.mxu0 0.0
        %610 = vmatprep.subr.mxu0 0.0
        %611 = vmatpush1.msra.mxu0 0.0
        %612 = vmatprep.subr.mxu0 0.0
        %613 = vmatpush1.msra.mxu0 0.0
        %614 = vmatprep.subr.mxu0 0.0
        %615 = vmatpush1.msra.mxu0 0.0
        %616 = vmatprep.subr.mxu0 0.0
        %617 = vmatpush1.msra.mxu0 0.0
        %618 = vmatprep.subr.mxu0 0.0
        %619 = vmatpush1.msra.mxu0 0.0
        %620 = vmatprep.subr.mxu0 0.0
        %621 = vmatpush1.msra.mxu0 0.0
        %622 = vmatprep.subr.mxu0 0.0
        %623 = vmatpush1.msra.mxu0 0.0
        %624 = vmatprep.subr.mxu0 0.0
        %625 = vmatpush1.msra.mxu0 %v285
        %626 = vmatprep.subr.mxu0 0.0
        %627 = vmatpush2.msra.mxu0 0.0
        %628 = vmatprep.subr.mxu0 0.0
        %629 = vmatpush2.msra.mxu0 0.0
        %630 = vmatprep.subr.mxu0 0.0
        %631 = vmatpush2.msra.mxu0 0.0
        %632 = vmatprep.subr.mxu0 0.0
        %633 = vmatpush2.msra.mxu0 0.0
        %634 = vmatprep.subr.mxu0 0.0
        %635 = vmatpush2.msra.mxu0 0.0
        %636 = vmatprep.subr.mxu0 0.0
        %637 = vmatpush2.msra.mxu0 0.0
        %638 = vmatprep.subr.mxu0 0.0
        %639 = vmatpush2.msra.mxu0 0.0
        %640 = vmatprep.subr.mxu0 0.0
        %641 = vmatpush2.msra.mxu0 0.0
        %642 = vmatprep.subr.mxu0 0.0
        %643 = vmatpush2.msra.mxu0 0.0
        %644 = vmatprep.subr.mxu0 0.0
        %645 = vmatpush2.msra.mxu0 0.0
        %646 = vmatprep.subr.mxu0 0.0
        %647 = vmatpush2.msra.mxu0 0.0
        %648 = vmatprep.subr.mxu0 0.0
        %649 = vmatpush2.msra.mxu0 0.0
        %650 = vmatprep.subr.mxu0 0.0
        %651 = vmatpush2.msra.mxu0 0.0
        %652 = vmatprep.subr.mxu0 0.0
        %653 = vmatpush2.msra.mxu0 0.0
        %654 = vmatprep.subr.mxu0 0.0
        %655 = vmatpush2.msra.mxu0 0.0
        %656 = vmatprep.subr.mxu0 0.0
        %657 = vmatpush2.msra.mxu0 0.0
        %658 = vmatprep.mubr.f32.mxu0 0.0
        %659 = vmatmul.mubr.f32.gmra.mxu0 %v592
        %v660 = vpop.f32.mrf.mxu0
        %v661 = vadd.f32 0.0, %v660
        %v662 = vpop.f32.mrf.mxu0
        %663 = vdwg.mxu0
        %v664 = vadd.f32 %v590, %v661
        %665 = vst.msk [vmem:[%s583] sm:$0xff] %vm299, %v664
        %666 = vst.msk [vmem:[%s558] sm:$0xff] %vm399, %v563
      $region40: #{attention_forward.4} parent=31 // pred_fallthru
        _
      // Predicated region
      $region41: #{attention_forward.4} parent=31 // pred_check
        %p667 = pneg %p265
      $region42: #{attention_forward.4} parent=31 // pred_check_branch
        %669 = sbr.rel (%p667) target = $region44
      $region43: #{attention_forward.4} parent=31 // pred_region
        %v670 = vld [vmem:[#allocation3] sm:$0xff]
        %v671 = vld [vmem:[#allocation3 + $0x8] sm:$0xff]
        %v672 = vrcp.pop %v670
        %v673 = vrcp.pop %v671
        %v674 = vld [vmem:[#allocation4] sm:$0xff]
        %v675 = vld [vmem:[#allocation4 + $0x8] sm:$0xff]
        %677 = vset.pattern.permute.xlu0 0
        %678 = vperm.xlu0 %677, %v672
        %v679 = vpop.permute.xlu0 %678
        %682 = vset.pattern.permute.xlu0 0
        %683 = vperm.xlu0 %682, %v673
        %v684 = vpop.permute.xlu0 %683
        %v686 = vmul.f32 %v674, %v679
        %v687 = vmul.f32 %v675, %v684
        %vm688 = vcmask 64512
        %689 = vst.msk [vmem:[%s264] sm:$0xff] %vm688, %v686
        %690 = vst.msk [vmem:[%s264 + $0x8] sm:$0xff] %vm688, %v687
      $region44: #{attention_forward.4} parent=31 // pred_fallthru
        _
      %p691 = scmp.lt.s32.totalorder %s19, 3
      %s692 = scalar_select %p691, %s19, 3
      %p693 = scmp.lt.s32.totalorder %s20, 0
      %s694 = scalar_select %p693, %s20, 0
      %s695 = smul.addr %s692, 2
      %s696 = sadd.s32 %s694, %s695
      %s697 = smul.addr %s696, 8
      %s698 = scalar_lea.vmem %s3, %s697
      // Predicated region
      $region45: #{attention_forward.4} parent=31 // pred_check
        %p699 = pneg %p137
      $region46: #{attention_forward.4} parent=31 // pred_check_branch
        %701 = sbr.rel (%p699) target = $region48
      $region47: #{attention_forward.4} parent=31 // pred_region
        _
      $region48: #{attention_forward.4} parent=31 // pred_fallthru
        _
    $region32: #{attention_forward.4} parent=5 // pred_fallthru
      _
    %p702 = scmp.le.s32.totalorder 2, %s9
    // Predicated region
    $region49: #{attention_forward.4} parent=5 // pred_check
      %p703 = pneg %p702
    $region50: #{attention_forward.4} parent=5 // pred_check_branch
      %705 = sbr.rel (%p703) target = $region52
    $region51: #{attention_forward.4} parent=5 // pred_region
      %s706 = ssub.s32 %s9, 2
      // Predicated region
      $region53: #{attention_forward.4} parent=51 // pred_check
        %p707 = pneg %p143
      $region54: #{attention_forward.4} parent=51 // pred_check_branch
        %709 = sbr.rel (%p707) target = $region56
      $region55: #{attention_forward.4} parent=51 // pred_region
        %p710 = scmp.lt.s32.totalorder %s22, 3
        %s711 = scalar_select %p710, %s22, 3
        %p712 = scmp.lt.s32.totalorder %s23, 0
        %s713 = scalar_select %p712, %s23, 0
        %s714 = smul.addr %s711, 2
        %s715 = sadd.s32 %s713, %s714
        %s716 = smul.addr %s715, 8
        %s717 = scalar_lea.vmem %s3, %s716
      $region56: #{attention_forward.4} parent=51 // pred_fallthru
        _
    $region52: #{attention_forward.4} parent=5 // pred_fallthru
      _
  $region6: #{attention_forward.4} parent=0 // loop_footer
    %s13 = sadd.s32 1, %s9
  $region7: #{attention_forward.4} parent=0 // loop_footer_branch
    %8 = sbr.rel target = $region3
  $region8: #{attention_forward.4} parent=0 // loop_exit
    _

</llo_original>
